<compile_context>
chip_gen: v7x
topology: tpu7x:2x2x1
jax: 0.10.0
libtpu: 0.0.40
codegen_flags: <defaults>
</compile_context>

<pallas_src>
import functools

import jax
import jax.numpy as jnp
from jax import lax
from jax.experimental import pallas as pl
from jax.experimental.pallas import tpu as pltpu

EPS = 1e-5


def _round_up(n, m):
    return ((n + m - 1) // m) * m


def _pick_bt(padded_batch, block_batch):
    """Largest multiple of 8 that divides padded_batch, is <= block_batch and, when
    the batch is big enough, leaves at least 2 grid steps (keeps both v7x
    TensorCores busy; costs nothing on single-TC v5e/v6e)."""
    cap = min(block_batch, padded_batch)
    if padded_batch >= 16:
        cap = min(cap, padded_batch // 2)
    cap = max(8, (cap // 8) * 8)
    bt = 8
    for cand in range(8, cap + 1, 8):
        if padded_batch % cand == 0:
            bt = cand
    return bt


def trl_kernel(x_ref, w_ref, pin_ref, pout_ref, o_ref, *, k_out, n_pad):
    # x_ref:   (BT, K_in)    input rows (flattened (A,B,C) tail), any float dtype
    # w_ref:   (K_in, K_pad) bf16 collapsed Tucker weight (zero-padded cols)
    # pin_ref: (2, K_in)     row 0 = gamma_in, row 1 = beta_in              (f32)
    # pout_ref:(3, K_pad)    rows = gamma_out, beta_out, bias row (zero-padded, f32)
    x = x_ref[...].astype(jnp.float32)

    # ---- input LayerNorm: row-wise over the flattened (A,B,C) tail, f32 stats ----
    mu = jnp.mean(x, axis=-1, keepdims=True)
    xc = x - mu
    var = jnp.mean(xc * xc, axis=-1, keepdims=True)
    xn = xc * lax.rsqrt(var + EPS) * pin_ref[0:1, :] + pin_ref[1:2, :]

    # ---- collapsed Tucker contraction: one MXU matmul (bf16 in, f32 acc) + bias ----
    y = jnp.dot(xn.astype(w_ref.dtype), w_ref[...],
                preferred_element_type=jnp.float32)
    y = y + pout_ref[2:3, :]

    # ---- output LayerNorm over the real k_out columns (centered variance).
    #      Padded columns of y are exact zeros (W pad cols and bias pads are zero),
    #      so sum(y) over the padded row is exact; for the centered second moment we
    #      subtract the n_pad * mu^2 that the (0 - mu) pad columns contribute. ----
    inv_k = 1.0 / k_out
    mu2 = jnp.sum(y, axis=-1, keepdims=True) * inv_k
    yc = y - mu2
    var2 = (jnp.sum(yc * yc, axis=-1, keepdims=True) - n_pad * (mu2 * mu2)) * inv_k
    var2 = jnp.maximum(var2, 0.0)
    o_ref[...] = (yc * lax.rsqrt(var2 + EPS) * pout_ref[0:1, :]
                  + pout_ref[1:2, :]).astype(o_ref.dtype)


def trl_forward(x, params, *, block_batch=512, kernel_out_dtype=jnp.bfloat16):
    # block_batch: 512 is safe on v5e's 16 MiB scoped VMEM; v6e/v7x can pass 1024.
    batch, A, B, C = x.shape
    k_in = A * B * C

    Fi0, Fi1, Fi2 = params['factors_inner']
    Fo0, Fo1, Fo2 = params['factors_outer']
    core = params['core']
    b0, b1, b2 = params['bias_list']
    D, E, F = Fo0.shape[1], Fo1.shape[1], Fo2.shape[1]
    k_out = D * E * F
    k_pad = _round_up(k_out, 128)   # keep at 128-multiple; wider only adds HBM traffic

    # ---- grid-invariant precompute, hoisted out of the kernel ----
    # W[(a,b,c),(d,e,f)] = sum Fi0[a,i]Fi1[b,j]Fi2[c,k] core[i,j,k,p,q,r]
    #                          Fo0[p,d]Fo1[q,e]Fo2[r,f]
    w_in = jnp.kron(jnp.kron(Fi0, Fi1), Fi2)                 # (k_in, Rin)
    w_out = jnp.kron(jnp.kron(Fo0, Fo1), Fo2)                # (Rout, k_out)
    r_in, r_out = w_in.shape[1], w_out.shape[0]
    W = jnp.dot(jnp.dot(w_in, core.reshape(r_in, r_out), precision='highest'),
                w_out, precision='highest')                  # (k_in, k_out) f32
    W = jnp.pad(W, ((0, 0), (0, k_pad - k_out))).astype(jnp.bfloat16)

    bias_row = jnp.einsum('rd,re,rf->def', b0, b1, b2).reshape(k_out)
    bias_row = jnp.pad(bias_row, (0, k_pad - k_out))

    p_in = jnp.stack([params['gin'].reshape(k_in),
                      params['bin'].reshape(k_in)]).astype(jnp.float32)
    p_out = jnp.stack(
        [jnp.pad(params['gout'].reshape(k_out), (0, k_pad - k_out)),
         jnp.pad(params['bout'].reshape(k_out), (0, k_pad - k_out)),
         bias_row]).astype(jnp.float32)

    # ---- batch tiling: no full-array pad/copy on the hot path ----
    x2 = x.reshape(batch, k_in)
    if batch % 8 != 0 and batch <= block_batch:
        # A block equal to the full batch dim is legal even when not 8-aligned.
        padded_batch, bt = batch, batch
    else:
        padded_batch = _round_up(batch, 8)
        if padded_batch != batch:
            # Rare ragged case: pad waste is at most 7 rows (<= one sublane tile).
            x2 = jnp.pad(x2, ((0, padded_batch - batch), (0, 0)))
        bt = _pick_bt(padded_batch, block_batch)

    out_itemsize = jnp.dtype(kernel_out_dtype).itemsize
    cost = pl.CostEstimate(
        flops=2 * padded_batch * k_in * k_pad + 10 * padded_batch * (k_in + k_pad),
        transcendentals=2 * padded_batch,
        bytes_accessed=(padded_batch * k_in * jnp.dtype(x2.dtype).itemsize
                        + W.size * 2 + p_in.size * 4 + p_out.size * 4
                        + padded_batch * k_pad * out_itemsize))

    out = pl.pallas_call(
        functools.partial(trl_kernel, k_out=k_out, n_pad=k_pad - k_out),
        out_shape=jax.ShapeDtypeStruct((padded_batch, k_pad), kernel_out_dtype),
        grid=(padded_batch // bt,),
        in_specs=[
            pl.BlockSpec((bt, k_in), lambda i: (i, 0)),
            pl.BlockSpec((k_in, k_pad), lambda i: (0, 0)),
            pl.BlockSpec((2, k_in), lambda i: (0, 0)),
            pl.BlockSpec((3, k_pad), lambda i: (0, 0)),
        ],
        out_specs=pl.BlockSpec((bt, k_pad), lambda i: (i, 0)),
        compiler_params=pltpu.CompilerParams(
            dimension_semantics=("parallel",)),
        cost_estimate=cost,
    )(x2, W, p_in, p_out)

    # Slice off pad columns/rows and restore the caller dtype + (D,E,F) shape.
    # TODO(synk): a consumer that accepts the lane-dense (batch, 640) bf16 layout
    # could skip this XLA slice/cast entirely.
    return out[:batch, :k_out].astype(x.dtype).reshape(batch, D, E, F)


if __name__ == "__main__":
    key = jax.random.PRNGKey(0)
    batch = 2
    A, B, C = 4, 8, 16          # input_shape  = (batch, 4, 8, 16), freeze_modes=[0]
    D, E, F = 5, 10, 12         # output_shape = (batch, 5, 10, 12)
    Ri = (3, 4, 4)              # core_shape[:3]
    Ro = (3, 4, 4)              # core_shape[3:]
    R = 1                       # bias_rank

    keys = jax.random.split(key, 11)
    x = jax.random.normal(keys[0], (batch, A, B, C), jnp.float32)
    params = dict(
        factors_inner=(jax.random.normal(keys[1], (A, Ri[0]), jnp.float32),
                       jax.random.normal(keys[2], (B, Ri[1]), jnp.float32),
                       jax.random.normal(keys[3], (C, Ri[2]), jnp.float32)),
        core=jax.random.normal(keys[4], Ri + Ro, jnp.float32),
        factors_outer=(jax.random.normal(keys[5], (Ro[0], D), jnp.float32),
                       jax.random.normal(keys[6], (Ro[1], E), jnp.float32),
                       jax.random.normal(keys[7], (Ro[2], F), jnp.float32)),
        bias_list=(jax.random.normal(keys[8], (R, D), jnp.float32),
                   jax.random.normal(keys[9], (R, E), jnp.float32),
                   jax.random.normal(keys[10], (R, F), jnp.float32)),
        # nn.LayerNorm default init: weight=1, bias=0 (deterministic)
        gin=jnp.ones((A, B, C), jnp.float32),
        bin=jnp.zeros((A, B, C), jnp.float32),
        gout=jnp.ones((D, E, F), jnp.float32),
        bout=jnp.zeros((D, E, F), jnp.float32),
    )

    y = jax.block_until_ready(trl_forward(x, params))

    # pure-JAX reference (same math as the PyTorch TRL.forward) for a sanity check
    def ref_fwd(x):
        p = params
        mu = jnp.mean(x, axis=(1, 2, 3), keepdims=True)
        var = jnp.mean((x - mu) ** 2, axis=(1, 2, 3), keepdims=True)
        xn = (x - mu) / jnp.sqrt(var + EPS) * p['gin'] + p['bin']
        Fi0, Fi1, Fi2 = p['factors_inner']
        Fo0, Fo1, Fo2 = p['factors_outer']
        yy = jnp.einsum('nabc,ai,bj,ck,ijkpqr,pd,qe,rf->ndef',
                        xn, Fi0, Fi1, Fi2, p['core'], Fo0, Fo1, Fo2,
                        precision='highest')
        b0, b1, b2 = p['bias_list']
        for r in range(R):
            yy = yy + (b0[r][:, None, None] * b1[r][None, :, None]
                       * b2[r][None, None, :])
        mu2 = jnp.mean(yy, axis=(1, 2, 3), keepdims=True)
        var2 = jnp.mean((yy - mu2) ** 2, axis=(1, 2, 3), keepdims=True)
        return (yy - mu2) / jnp.sqrt(var2 + EPS) * p['gout'] + p['bout']

    y_ref = ref_fwd(x)
    assert y.shape == (batch, D, E, F)
    assert jnp.allclose(y, y_ref, atol=3e-2, rtol=3e-2), \
        float(jnp.max(jnp.abs(y - y_ref)))
    print("KERNEL_OK")
</pallas_src>

<mosaic_0001>
module attributes {stable_mosaic.version = 11 : i64} {
  func.func @trl_kernel(%arg0: i32, %arg1: memref<2x512xf32, #tpu.memory_space<vmem>>, %arg2: memref<512x640xbf16, #tpu.memory_space<vmem>>, %arg3: memref<2x512xf32, #tpu.memory_space<vmem>>, %arg4: memref<3x640xf32, #tpu.memory_space<vmem>>, %arg5: memref<2x640xbf16, #tpu.memory_space<vmem>>) attributes {dimension_semantics = [#tpu.dimension_semantics<parallel>], iteration_bounds = array<i64: 1>, scalar_prefetch = 0 : i64, scratch_operands = 0 : i64, tpu.core_type = #tpu.core_type<tc>, window_params = [{transform_indices = @transform_0, window_bounds = array<i64: 2, 512>}, {pipeline_mode = #tpu.pipeline_mode<synchronous>, transform_indices = @transform_1, window_bounds = array<i64: 512, 640>}, {pipeline_mode = #tpu.pipeline_mode<synchronous>, transform_indices = @transform_2, window_bounds = array<i64: 2, 512>}, {pipeline_mode = #tpu.pipeline_mode<synchronous>, transform_indices = @transform_3, window_bounds = array<i64: 3, 640>}, {transform_indices = @transform_4, window_bounds = array<i64: 2, 640>}]} {
    %c0 = arith.constant 0 : index
    %c0_0 = arith.constant 0 : index
    %0 = vector.load %arg1[%c0, %c0_0] : memref<2x512xf32, #tpu.memory_space<vmem>>, vector<2x512xf32>
    %cst = arith.constant dense<0.000000e+00> : vector<2xf32>
    %1 = vector.multi_reduction <add>, %0, %cst [1] : vector<2x512xf32> to vector<2xf32>
    %2 = vector.shape_cast %1 : vector<2xf32> to vector<2x1xf32>
    %cst_1 = arith.constant 5.120000e+02 : f32
    %3 = vector.broadcast %cst_1 : f32 to vector<2x1xf32>
    %4 = arith.divf %2, %3 : vector<2x1xf32>
    %5 = vector.broadcast %4 : vector<2x1xf32> to vector<2x512xf32>
    %6 = arith.subf %0, %5 : vector<2x512xf32>
    %7 = arith.mulf %6, %6 : vector<2x512xf32>
    %cst_2 = arith.constant dense<0.000000e+00> : vector<2xf32>
    %8 = vector.multi_reduction <add>, %7, %cst_2 [1] : vector<2x512xf32> to vector<2xf32>
    %9 = vector.shape_cast %8 : vector<2xf32> to vector<2x1xf32>
    %cst_3 = arith.constant 5.120000e+02 : f32
    %10 = vector.broadcast %cst_3 : f32 to vector<2x1xf32>
    %11 = arith.divf %9, %10 : vector<2x1xf32>
    %cst_4 = arith.constant 9.99999974E-6 : f32
    %12 = vector.broadcast %cst_4 : f32 to vector<2x1xf32>
    %13 = arith.addf %11, %12 : vector<2x1xf32>
    %14 = math.rsqrt %13 : vector<2x1xf32>
    %15 = vector.broadcast %14 : vector<2x1xf32> to vector<2x512xf32>
    %16 = arith.mulf %6, %15 : vector<2x512xf32>
    %c0_5 = arith.constant 0 : index
    %c0_6 = arith.constant 0 : index
    %17 = vector.load %arg3[%c0_5, %c0_6] : memref<2x512xf32, #tpu.memory_space<vmem>>, vector<1x512xf32>
    %18 = vector.broadcast %17 : vector<1x512xf32> to vector<2x512xf32>
    %19 = arith.mulf %16, %18 : vector<2x512xf32>
    %c1 = arith.constant 1 : index
    %c0_7 = arith.constant 0 : index
    %20 = vector.load %arg3[%c1, %c0_7] : memref<2x512xf32, #tpu.memory_space<vmem>>, vector<1x512xf32>
    %21 = vector.broadcast %20 : vector<1x512xf32> to vector<2x512xf32>
    %22 = arith.addf %19, %21 : vector<2x512xf32>
    %23 = arith.truncf %22 : vector<2x512xf32> to vector<2x512xbf16>
    %c0_8 = arith.constant 0 : index
    %c0_9 = arith.constant 0 : index
    %24 = vector.load %arg2[%c0_8, %c0_9] : memref<512x640xbf16, #tpu.memory_space<vmem>>, vector<512x640xbf16>
    %cst_10 = arith.constant dense<0.000000e+00> : vector<2x640xf32>
    %25 = tpu.matmul %23, %24, %cst_10 {dimension_numbers = #tpu.dot_dimension_numbers<[1], [0], [0], [1], [0, 0, 1, 1], [], []>} : vector<2x512xbf16>, vector<512x640xbf16>, vector<2x640xf32> -> vector<2x640xf32>
    %c2 = arith.constant 2 : index
    %c0_11 = arith.constant 0 : index
    %26 = vector.load %arg4[%c2, %c0_11] : memref<3x640xf32, #tpu.memory_space<vmem>>, vector<1x640xf32>
    %27 = vector.broadcast %26 : vector<1x640xf32> to vector<2x640xf32>
    %28 = arith.addf %25, %27 : vector<2x640xf32>
    %cst_12 = arith.constant dense<0.000000e+00> : vector<2xf32>
    %29 = vector.multi_reduction <add>, %28, %cst_12 [1] : vector<2x640xf32> to vector<2xf32>
    %30 = vector.shape_cast %29 : vector<2xf32> to vector<2x1xf32>
    %cst_13 = arith.constant 0.00166666671 : f32
    %31 = vector.broadcast %cst_13 : f32 to vector<2x1xf32>
    %32 = arith.mulf %30, %31 : vector<2x1xf32>
    %33 = vector.broadcast %32 : vector<2x1xf32> to vector<2x640xf32>
    %34 = arith.subf %28, %33 : vector<2x640xf32>
    %35 = arith.mulf %34, %34 : vector<2x640xf32>
    %cst_14 = arith.constant dense<0.000000e+00> : vector<2xf32>
    %36 = vector.multi_reduction <add>, %35, %cst_14 [1] : vector<2x640xf32> to vector<2xf32>
    %37 = vector.shape_cast %36 : vector<2xf32> to vector<2x1xf32>
    %38 = arith.mulf %32, %32 : vector<2x1xf32>
    %cst_15 = arith.constant 4.000000e+01 : f32
    %39 = vector.broadcast %cst_15 : f32 to vector<2x1xf32>
    %40 = arith.mulf %39, %38 : vector<2x1xf32>
    %41 = arith.subf %37, %40 : vector<2x1xf32>
    %cst_16 = arith.constant 0.00166666671 : f32
    %42 = vector.broadcast %cst_16 : f32 to vector<2x1xf32>
    %43 = arith.mulf %41, %42 : vector<2x1xf32>
    %cst_17 = arith.constant 0.000000e+00 : f32
    %44 = vector.broadcast %cst_17 : f32 to vector<2x1xf32>
    %45 = arith.maximumf %43, %44 : vector<2x1xf32>
    %cst_18 = arith.constant 9.99999974E-6 : f32
    %46 = vector.broadcast %cst_18 : f32 to vector<2x1xf32>
    %47 = arith.addf %45, %46 : vector<2x1xf32>
    %48 = math.rsqrt %47 : vector<2x1xf32>
    %49 = vector.broadcast %48 : vector<2x1xf32> to vector<2x640xf32>
    %50 = arith.mulf %34, %49 : vector<2x640xf32>
    %c0_19 = arith.constant 0 : index
    %c0_20 = arith.constant 0 : index
    %51 = vector.load %arg4[%c0_19, %c0_20] : memref<3x640xf32, #tpu.memory_space<vmem>>, vector<1x640xf32>
    %52 = vector.broadcast %51 : vector<1x640xf32> to vector<2x640xf32>
    %53 = arith.mulf %50, %52 : vector<2x640xf32>
    %c1_21 = arith.constant 1 : index
    %c0_22 = arith.constant 0 : index
    %54 = vector.load %arg4[%c1_21, %c0_22] : memref<3x640xf32, #tpu.memory_space<vmem>>, vector<1x640xf32>
    %55 = vector.broadcast %54 : vector<1x640xf32> to vector<2x640xf32>
    %56 = arith.addf %53, %55 : vector<2x640xf32>
    %57 = arith.truncf %56 : vector<2x640xf32> to vector<2x640xbf16>
    %c0_23 = arith.constant 0 : index
    %c0_24 = arith.constant 0 : index
    %58 = vector.load %arg5[%c0_23, %c0_24] : memref<2x640xbf16, #tpu.memory_space<vmem>>, vector<2x640xbf16>
    tpu.vector_store %arg5[%c0_23, %c0_24], %57 {strides = array<i32>} : memref<2x640xbf16, #tpu.memory_space<vmem>>, vector<2x640xbf16>,
    return
  }
  func.func @transform_0(%arg0: i32) -> (i32, i32) {
    %c0_i32 = arith.constant 0 : i32
    %c0_i32_0 = arith.constant 0 : i32
    return %arg0, %c0_i32 : i32, i32
  }
  func.func @transform_1(%arg0: i32) -> (i32, i32) {
    %c0_i32 = arith.constant 0 : i32
    %c0_i32_0 = arith.constant 0 : i32
    %c0_i32_1 = arith.constant 0 : i32
    return %c0_i32, %c0_i32_0 : i32, i32
  }
  func.func @transform_2(%arg0: i32) -> (i32, i32) {
    %c0_i32 = arith.constant 0 : i32
    %c0_i32_0 = arith.constant 0 : i32
    %c0_i32_1 = arith.constant 0 : i32
    return %c0_i32, %c0_i32_0 : i32, i32
  }
  func.func @transform_3(%arg0: i32) -> (i32, i32) {
    %c0_i32 = arith.constant 0 : i32
    %c0_i32_0 = arith.constant 0 : i32
    %c0_i32_1 = arith.constant 0 : i32
    return %c0_i32, %c0_i32_0 : i32, i32
  }
  func.func @transform_4(%arg0: i32) -> (i32, i32) {
    %c0_i32 = arith.constant 0 : i32
    %c0_i32_0 = arith.constant 0 : i32
    return %arg0, %c0_i32 : i32, i32
  }
}

</mosaic_0001>

<llo_original>
// kernel: tpu_custom_call.1
$region0: #{tpu_custom_call.1}
  #allocation0 [shape = 'u32[]', space=smem, size = 0x4, offset = 0x4, fixed_abs, tag = 'smem constant byte address 0x4 - core index']
  #allocation1 [shape = 'u32[144,128]{1,0:T(1,128)}', space=vmem, size = 0x12000, scoped, tag = 'internal scratch']
  %s0 = inlined_call_operand.hbm [shape: f32[2,512], index: 0, kind: input, shape index: {}]
  %s1 = inlined_call_operand.hbm [shape: bf16[512,640], index: 1, kind: input, shape index: {}]
  %s2 = inlined_call_operand.hbm [shape: f32[2,512], index: 2, kind: input, shape index: {}]
  %s3 = inlined_call_operand.hbm [shape: f32[3,640], index: 3, kind: input, shape index: {}]
  %s4 = inlined_call_operand.hbm [shape: bf16[2,640], index: 4, kind: output, shape index: {}]
  %s5 = sld [smem:[#allocation0]]
  $region42: #{tpu_custom_call.1} parent=0
    _
  %s7 = ssub.s32 1, %s5
  %s8 = scalar_select 0, %s7, %s5
  $region1: #{tpu_custom_call.1} parent=0
    #allocation2 [shape = 'u8[4096]{0}', space=vmem, size = 0x1000, scoped, tag = 'input window, operand 0, single buffered']
    #allocation3 [shape = 's32[1]{0}', space=sflag, size = 0x4, scoped, tag = 'scoped memory for tpu_custom_call.1']
    #allocation4 [shape = 's32[1]{0}', space=sflag, size = 0x4, scoped, tag = 'scoped memory for tpu_custom_call.1']
    #allocation5 [shape = 'u8[655360]{0}', space=vmem, size = 0xa0000, scoped, tag = 'input window, operand 1, single buffered']
    #allocation6 [shape = 's32[1]{0}', space=sflag, size = 0x4, scoped, tag = 'scoped memory for tpu_custom_call.1']
    #allocation7 [shape = 'u8[4096]{0}', space=vmem, size = 0x1000, scoped, tag = 'input window, operand 2, single buffered']
    #allocation8 [shape = 'u8[10240]{0}', space=vmem, size = 0x2800, scoped, tag = 'input window, operand 3, single buffered']
    #allocation9 [shape = 's32[1]{0}', space=sflag, size = 0x4, scoped, tag = 'scoped memory for tpu_custom_call.1']
    #allocation10 [shape = 'u8[2560]{0}', space=vmem, size = 0xc00, scoped, tag = 'output window, operand 0, single buffered']
    %9 = vsyncpa [#allocation3], 0
    %10 = vsyncpa [#allocation6], 0
    %11 = vsyncpa [#allocation9], 0
    %12 = vsyncpa [#allocation4], 0
    // Predicated region
    $region2: #{tpu_custom_call.1} parent=1 // pred_check
      _
    $region3: #{tpu_custom_call.1} parent=1 // pred_check_branch
      %14 = sbr.rel (0) target = $region5
    $region4: #{tpu_custom_call.1} parent=1 // pred_region
      %s16 = ssub.s32 128, 128
      %17 = vsyncadd [#allocation3], %s16
      %s19 = sshll.u32 [#allocation2], 4
      %s20 = int_to_ptr.vmem [resolvable:$true] %s19
      %22 = dma.hbm_to_vmem [thread:$0]  %s0, 128, %s20, [#allocation3]
    $region5: #{tpu_custom_call.1} parent=1 // pred_fallthru
      _
    // Predicated region
    $region6: #{tpu_custom_call.1} parent=1 // pred_check
      _
    $region7: #{tpu_custom_call.1} parent=1 // pred_check_branch
      %24 = sbr.rel (0) target = $region9
    $region8: #{tpu_custom_call.1} parent=1 // pred_region
      %s26 = ssub.s32 20480, 20480
      %27 = vsyncadd [#allocation6], %s26
      %s28 = sshll.u32 [#allocation5], 4
      %s29 = int_to_ptr.vmem [resolvable:$true] %s28
      %34 = dma.hbm_to_vmem [thread:$0]  %s1, 20480, %s29, [#allocation6], 320, 320, 20
    $region9: #{tpu_custom_call.1} parent=1 // pred_fallthru
      _
    // Predicated region
    $region10: #{tpu_custom_call.1} parent=1 // pred_check
      _
    $region11: #{tpu_custom_call.1} parent=1 // pred_check_branch
      %36 = sbr.rel (0) target = $region13
    $region12: #{tpu_custom_call.1} parent=1 // pred_region
      %s38 = ssub.s32 128, 128
      %39 = vsyncadd [#allocation6], %s38
      %s41 = sshll.u32 [#allocation7], 4
      %s42 = int_to_ptr.vmem [resolvable:$true] %s41
      %44 = dma.hbm_to_vmem [thread:$0]  %s2, 128, %s42, [#allocation6]
    $region13: #{tpu_custom_call.1} parent=1 // pred_fallthru
      _
    // Predicated region
    $region14: #{tpu_custom_call.1} parent=1 // pred_check
      _
    $region15: #{tpu_custom_call.1} parent=1 // pred_check_branch
      %46 = sbr.rel (0) target = $region17
    $region16: #{tpu_custom_call.1} parent=1 // pred_region
      %s48 = ssub.s32 320, 320
      %49 = vsyncadd [#allocation9], %s48
      %s51 = sshll.u32 [#allocation8], 4
      %s52 = int_to_ptr.vmem [resolvable:$true] %s51
      %54 = dma.hbm_to_vmem [thread:$0]  %s3, 320, %s52, [#allocation9]
    $region17: #{tpu_custom_call.1} parent=1 // pred_fallthru
      _
    // Predicated region
    $region18: #{tpu_custom_call.1} parent=1 // pred_check
      _
    $region19: #{tpu_custom_call.1} parent=1 // pred_check_branch
      %56 = sbr.rel (0) target = $region21
    $region20: #{tpu_custom_call.1} parent=1 // pred_region
      %57 = dma.done [#allocation3], 128
    $region21: #{tpu_custom_call.1} parent=1 // pred_fallthru
      _
    // Predicated region
    $region22: #{tpu_custom_call.1} parent=1 // pred_check
      _
    $region23: #{tpu_custom_call.1} parent=1 // pred_check_branch
      %59 = sbr.rel (0) target = $region25
    $region24: #{tpu_custom_call.1} parent=1 // pred_region
      %60 = dma.done [#allocation6], 20480
    $region25: #{tpu_custom_call.1} parent=1 // pred_fallthru
      _
    // Predicated region
    $region26: #{tpu_custom_call.1} parent=1 // pred_check
      _
    $region27: #{tpu_custom_call.1} parent=1 // pred_check_branch
      %62 = sbr.rel (0) target = $region29
    $region28: #{tpu_custom_call.1} parent=1 // pred_region
      %63 = dma.done [#allocation6], 128
    $region29: #{tpu_custom_call.1} parent=1 // pred_fallthru
      _
    // Predicated region
    $region30: #{tpu_custom_call.1} parent=1 // pred_check
      _
    $region31: #{tpu_custom_call.1} parent=1 // pred_check_branch
      %65 = sbr.rel (0) target = $region33
    $region32: #{tpu_custom_call.1} parent=1 // pred_region
      %66 = dma.done [#allocation9], 320
    $region33: #{tpu_custom_call.1} parent=1 // pred_fallthru
      _
    %v68 = vld [vmem:[#allocation2] sm:$0xff]
    %v70 = vcombine.high %v68, %v68
    %v72 = vunpack.c.l.s4 1983009808
    %v73 = vunpack.c.0.s8 %v72
    %v74 = vlaneseq
    %v75 = vshrl.u32 %v74, 7
    %v76 = vsub.s32 %v73, %v75
    %v77 = vrot.slane %v68, %v76
    %v79 = vunpack.c.l.s4 1983009808
    %v80 = vunpack.c.0.s8 %v79
    %v81 = vlaneseq
    %v82 = vshrl.u32 %v81, 7
    %v83 = vsub.s32 %v80, %v82
    %v84 = vrot.slane %v70, %v83
    %v85 = vcombine.high %v77, %v77
    %v86 = vcombine.high %v84, %v84
    %vm91 = vcmask 1041408
    %v92 = vsel %vm91, %v77, 0.0
    %v93 = vsel %vm91, %v85, 0.0
    %v94 = vadd.f32 %v92, %v93
    %v95 = vsel %vm91, %v84, 0.0
    %v96 = vadd.f32 %v94, %v95
    %v97 = vsel %vm91, %v86, 0.0
    %v98 = vadd.f32 %v96, %v97
    %99 = vadd.xlane.f32.xlu0 %v98
    %v100 = vpop.xlane.xlu0 %99
    %v101 = vrcp.pop 512.0
    %v102 = vmul.f32 %v100, %v101
    %v105 = vunpack.c.l.s4 269488144
    %v106 = vunpack.c.0.s8 %v105
    %v107 = vlaneseq
    %v108 = vshrl.u32 %v107, 7
    %v109 = vsub.s32 %v106, %v108
    %v110 = vrot.slane %v102, %v109
    %v112 = vsub.f32 %v68, %v110
    %v113 = vmul.f32 %v112, %v112
    %v115 = vcombine.high %v113, %v113
    %v117 = vunpack.c.l.s4 1983009808
    %v118 = vunpack.c.0.s8 %v117
    %v119 = vlaneseq
    %v120 = vshrl.u32 %v119, 7
    %v121 = vsub.s32 %v118, %v120
    %v122 = vrot.slane %v113, %v121
    %v124 = vunpack.c.l.s4 1983009808
    %v125 = vunpack.c.0.s8 %v124
    %v126 = vlaneseq
    %v127 = vshrl.u32 %v126, 7
    %v128 = vsub.s32 %v125, %v127
    %v129 = vrot.slane %v115, %v128
    %v130 = vcombine.high %v122, %v122
    %v131 = vcombine.high %v129, %v129
    %v136 = vsel %vm91, %v122, 0.0
    %v137 = vsel %vm91, %v130, 0.0
    %v138 = vadd.f32 %v136, %v137
    %v139 = vsel %vm91, %v129, 0.0
    %v140 = vadd.f32 %v138, %v139
    %v141 = vsel %vm91, %v131, 0.0
    %v142 = vadd.f32 %v140, %v141
    %143 = vadd.xlane.f32.xlu0 %v142
    %v144 = vpop.xlane.xlu0 %143
    %v145 = vmul.f32 %v144, %v101
    %v146 = vadd.f32 %v145, 1e-05
    %v147 = vrsqrt.pop %v146
    %v150 = vunpack.c.l.s4 269488144
    %v151 = vunpack.c.0.s8 %v150
    %v152 = vlaneseq
    %v153 = vshrl.u32 %v152, 7
    %v154 = vsub.s32 %v151, %v153
    %v155 = vrot.slane %v147, %v154
    %v157 = vmul.f32 %v112, %v155
    %v158 = vld [vmem:[#allocation7] ss:$2 sm:$0xf]
    %v160 = vlaneseq
    %v161 = vshrl.u32 %v160, 7
    %v162 = vsub.s32 0, %v161
    %v163 = vrot.slane %v158, %v162
    %v164 = vlaneseq
    %v165 = vshrl.u32 %v164, 7
    %v166 = vsub.s32 1, %v165
    %v167 = vrot.slane %v158, %v166
    %v168 = vlaneseq
    %v169 = vshrl.u32 %v168, 7
    %v170 = vsub.s32 2, %v169
    %v171 = vrot.slane %v158, %v170
    %v172 = vlaneseq
    %v173 = vshrl.u32 %v172, 7
    %v174 = vsub.s32 3, %v173
    %v175 = vrot.slane %v158, %v174
    %v176 = vcombine.low %v163, %v167
    %v177 = vcombine.low %v171, %v175
    %v179 = vunpack.c.l.s4 1983009808
    %v180 = vunpack.c.0.s8 %v179
    %v181 = vlaneseq
    %v182 = vshrl.u32 %v181, 7
    %v183 = vsub.s32 %v180, %v182
    %v184 = vrot.slane %v176, %v183
    %v186 = vunpack.c.l.s4 1983009808
    %v187 = vunpack.c.0.s8 %v186
    %v188 = vlaneseq
    %v189 = vshrl.u32 %v188, 7
    %v190 = vsub.s32 %v187, %v189
    %v191 = vrot.slane %v177, %v190
    %v192 = vcombine.low %v184, %v191
    %v194 = vmul.f32 %v157, %v192
    %s195 = scalar_lea.vmem [#allocation7], 1
    %v196 = vld [vmem:[%s195] ss:$2 sm:$0xf]
    %v198 = vlaneseq
    %v199 = vshrl.u32 %v198, 7
    %v200 = vsub.s32 0, %v199
    %v201 = vrot.slane %v196, %v200
    %v202 = vlaneseq
    %v203 = vshrl.u32 %v202, 7
    %v204 = vsub.s32 1, %v203
    %v205 = vrot.slane %v196, %v204
    %v206 = vlaneseq
    %v207 = vshrl.u32 %v206, 7
    %v208 = vsub.s32 2, %v207
    %v209 = vrot.slane %v196, %v208
    %v210 = vlaneseq
    %v211 = vshrl.u32 %v210, 7
    %v212 = vsub.s32 3, %v211
    %v213 = vrot.slane %v196, %v212
    %v214 = vcombine.low %v201, %v205
    %v215 = vcombine.low %v209, %v213
    %v217 = vunpack.c.l.s4 1983009808
    %v218 = vunpack.c.0.s8 %v217
    %v219 = vlaneseq
    %v220 = vshrl.u32 %v219, 7
    %v221 = vsub.s32 %v218, %v220
    %v222 = vrot.slane %v214, %v221
    %v224 = vunpack.c.l.s4 1983009808
    %v225 = vunpack.c.0.s8 %v224
    %v226 = vlaneseq
    %v227 = vshrl.u32 %v226, 7
    %v228 = vsub.s32 %v225, %v227
    %v229 = vrot.slane %v215, %v228
    %v230 = vcombine.low %v222, %v229
    %v232 = vadd.f32 %v194, %v230
    %v234 = vcombine.high %v232, %v232
    %v236 = vunpack.c.l.s4 1983009808
    %v237 = vunpack.c.0.s8 %v236
    %v238 = vlaneseq
    %v239 = vshrl.u32 %v238, 7
    %v240 = vsub.s32 %v237, %v239
    %v241 = vrot.slane %v232, %v240
    %v243 = vunpack.c.l.s4 1983009808
    %v244 = vunpack.c.0.s8 %v243
    %v245 = vlaneseq
    %v246 = vshrl.u32 %v245, 7
    %v247 = vsub.s32 %v244, %v246
    %v248 = vrot.slane %v234, %v247
    %v249 = vcombine.high %v241, %v241
    %v250 = vcombine.high %v248, %v248
    %v255 = vpack.c.bf16 %v241, %v241
    %v256 = vpack.c.bf16 %v249, %v249
    %v257 = vpack.c.bf16 %v248, %v248
    %v258 = vpack.c.bf16 %v250, %v250
    %v259 = vld [vmem:[#allocation5] sm:$0xff]
    %v260 = vld [vmem:[#allocation5 + $0x8] sm:$0xff]
    %v261 = vld [vmem:[#allocation5 + $0x10] sm:$0xf]
    %v262 = vld [vmem:[#allocation5 + $0x14] sm:$0xff]
    %v263 = vld [vmem:[#allocation5 + $0x1c] sm:$0xff]
    %v264 = vld [vmem:[#allocation5 + $0x24] sm:$0xf]
    %v265 = vld [vmem:[#allocation5 + $0x28] sm:$0xff]
    %v266 = vld [vmem:[#allocation5 + $0x30] sm:$0xff]
    %v267 = vld [vmem:[#allocation5 + $0x38] sm:$0xf]
    %v268 = vld [vmem:[#allocation5 + $0x3c] sm:$0xff]
    %v269 = vld [vmem:[#allocation5 + $0x44] sm:$0xff]
    %v270 = vld [vmem:[#allocation5 + $0x4c] sm:$0xf]
    %v271 = vld [vmem:[#allocation5 + $0x50] sm:$0xff]
    %v272 = vld [vmem:[#allocation5 + $0x58] sm:$0xff]
    %v273 = vld [vmem:[#allocation5 + $0x60] sm:$0xf]
    %v274 = vld [vmem:[#allocation5 + $0x64] sm:$0xff]
    %v275 = vld [vmem:[#allocation5 + $0x6c] sm:$0xff]
    %v276 = vld [vmem:[#allocation5 + $0x74] sm:$0xf]
    %v277 = vld [vmem:[#allocation5 + $0x78] sm:$0xff]
    %v278 = vld [vmem:[#allocation5 + $0x80] sm:$0xff]
    %v279 = vld [vmem:[#allocation5 + $0x88] sm:$0xf]
    %v280 = vld [vmem:[#allocation5 + $0x8c] sm:$0xff]
    %v281 = vld [vmem:[#allocation5 + $0x94] sm:$0xff]
    %v282 = vld [vmem:[#allocation5 + $0x9c] sm:$0xf]
    %v283 = vld [vmem:[#allocation5 + $0xa0] sm:$0xff]
    %v284 = vld [vmem:[#allocation5 + $0xa8] sm:$0xff]
    %v285 = vld [vmem:[#allocation5 + $0xb0] sm:$0xf]
    %v286 = vld [vmem:[#allocation5 + $0xb4] sm:$0xff]
    %v287 = vld [vmem:[#allocation5 + $0xbc] sm:$0xff]
    %v288 = vld [vmem:[#allocation5 + $0xc4] sm:$0xf]
    %v289 = vld [vmem:[#allocation5 + $0xc8] sm:$0xff]
    %v290 = vld [vmem:[#allocation5 + $0xd0] sm:$0xff]
    %v291 = vld [vmem:[#allocation5 + $0xd8] sm:$0xf]
    %v292 = vld [vmem:[#allocation5 + $0xdc] sm:$0xff]
    %v293 = vld [vmem:[#allocation5 + $0xe4] sm:$0xff]
    %v294 = vld [vmem:[#allocation5 + $0xec] sm:$0xf]
    %v295 = vld [vmem:[#allocation5 + $0xf0] sm:$0xff]
    %v296 = vld [vmem:[#allocation5 + $0xf8] sm:$0xff]
    %v297 = vld [vmem:[#allocation5 + $0x100] sm:$0xf]
    %v298 = vld [vmem:[#allocation5 + $0x104] sm:$0xff]
    %v299 = vld [vmem:[#allocation5 + $0x10c] sm:$0xff]
    %v300 = vld [vmem:[#allocation5 + $0x114] sm:$0xf]
    %v301 = vld [vmem:[#allocation5 + $0x118] sm:$0xff]
    %v302 = vld [vmem:[#allocation5 + $0x120] sm:$0xff]
    %v303 = vld [vmem:[#allocation5 + $0x128] sm:$0xf]
    %v304 = vld [vmem:[#allocation5 + $0x12c] sm:$0xff]
    %v305 = vld [vmem:[#allocation5 + $0x134] sm:$0xff]
    %v306 = vld [vmem:[#allocation5 + $0x13c] sm:$0xf]
    %v307 = vld [vmem:[#allocation5 + $0x140] sm:$0xff]
    %v308 = vld [vmem:[#allocation5 + $0x148] sm:$0xff]
    %v309 = vld [vmem:[#allocation5 + $0x150] sm:$0xf]
    %v310 = vld [vmem:[#allocation5 + $0x154] sm:$0xff]
    %v311 = vld [vmem:[#allocation5 + $0x15c] sm:$0xff]
    %v312 = vld [vmem:[#allocation5 + $0x164] sm:$0xf]
    %v313 = vld [vmem:[#allocation5 + $0x168] sm:$0xff]
    %v314 = vld [vmem:[#allocation5 + $0x170] sm:$0xff]
    %v315 = vld [vmem:[#allocation5 + $0x178] sm:$0xf]
    %v316 = vld [vmem:[#allocation5 + $0x17c] sm:$0xff]
    %v317 = vld [vmem:[#allocation5 + $0x184] sm:$0xff]
    %v318 = vld [vmem:[#allocation5 + $0x18c] sm:$0xf]
    %v319 = vld [vmem:[#allocation5 + $0x190] sm:$0xff]
    %v320 = vld [vmem:[#allocation5 + $0x198] sm:$0xff]
    %v321 = vld [vmem:[#allocation5 + $0x1a0] sm:$0xf]
    %v322 = vld [vmem:[#allocation5 + $0x1a4] sm:$0xff]
    %v323 = vld [vmem:[#allocation5 + $0x1ac] sm:$0xff]
    %v324 = vld [vmem:[#allocation5 + $0x1b4] sm:$0xf]
    %v325 = vld [vmem:[#allocation5 + $0x1b8] sm:$0xff]
    %v326 = vld [vmem:[#allocation5 + $0x1c0] sm:$0xff]
    %v327 = vld [vmem:[#allocation5 + $0x1c8] sm:$0xf]
    %v328 = vld [vmem:[#allocation5 + $0x1cc] sm:$0xff]
    %v329 = vld [vmem:[#allocation5 + $0x1d4] sm:$0xff]
    %v330 = vld [vmem:[#allocation5 + $0x1dc] sm:$0xf]
    %v331 = vld [vmem:[#allocation5 + $0x1e0] sm:$0xff]
    %v332 = vld [vmem:[#allocation5 + $0x1e8] sm:$0xff]
    %v333 = vld [vmem:[#allocation5 + $0x1f0] sm:$0xf]
    %v334 = vld [vmem:[#allocation5 + $0x1f4] sm:$0xff]
    %v335 = vld [vmem:[#allocation5 + $0x1fc] sm:$0xff]
    %v336 = vld [vmem:[#allocation5 + $0x204] sm:$0xf]
    %v337 = vld [vmem:[#allocation5 + $0x208] sm:$0xff]
    %v338 = vld [vmem:[#allocation5 + $0x210] sm:$0xff]
    %v339 = vld [vmem:[#allocation5 + $0x218] sm:$0xf]
    %v340 = vld [vmem:[#allocation5 + $0x21c] sm:$0xff]
    %v341 = vld [vmem:[#allocation5 + $0x224] sm:$0xff]
    %v342 = vld [vmem:[#allocation5 + $0x22c] sm:$0xf]
    %v343 = vld [vmem:[#allocation5 + $0x230] sm:$0xff]
    %v344 = vld [vmem:[#allocation5 + $0x238] sm:$0xff]
    %v345 = vld [vmem:[#allocation5 + $0x240] sm:$0xf]
    %v346 = vld [vmem:[#allocation5 + $0x244] sm:$0xff]
    %v347 = vld [vmem:[#allocation5 + $0x24c] sm:$0xff]
    %v348 = vld [vmem:[#allocation5 + $0x254] sm:$0xf]
    %v349 = vld [vmem:[#allocation5 + $0x258] sm:$0xff]
    %v350 = vld [vmem:[#allocation5 + $0x260] sm:$0xff]
    %v351 = vld [vmem:[#allocation5 + $0x268] sm:$0xf]
    %v352 = vld [vmem:[#allocation5 + $0x26c] sm:$0xff]
    %v353 = vld [vmem:[#allocation5 + $0x274] sm:$0xff]
    %v354 = vld [vmem:[#allocation5 + $0x27c] sm:$0xf]
    %v355 = vld [vmem:[#allocation5 + $0x280] sm:$0xff]
    %v356 = vld [vmem:[#allocation5 + $0x288] sm:$0xff]
    %v357 = vld [vmem:[#allocation5 + $0x290] sm:$0xf]
    %v358 = vld [vmem:[#allocation5 + $0x294] sm:$0xff]
    %v359 = vld [vmem:[#allocation5 + $0x29c] sm:$0xff]
    %v360 = vld [vmem:[#allocation5 + $0x2a4] sm:$0xf]
    %v361 = vld [vmem:[#allocation5 + $0x2a8] sm:$0xff]
    %v362 = vld [vmem:[#allocation5 + $0x2b0] sm:$0xff]
    %v363 = vld [vmem:[#allocation5 + $0x2b8] sm:$0xf]
    %v364 = vld [vmem:[#allocation5 + $0x2bc] sm:$0xff]
    %v365 = vld [vmem:[#allocation5 + $0x2c4] sm:$0xff]
    %v366 = vld [vmem:[#allocation5 + $0x2cc] sm:$0xf]
    %v367 = vld [vmem:[#allocation5 + $0x2d0] sm:$0xff]
    %v368 = vld [vmem:[#allocation5 + $0x2d8] sm:$0xff]
    %v369 = vld [vmem:[#allocation5 + $0x2e0] sm:$0xf]
    %v370 = vld [vmem:[#allocation5 + $0x2e4] sm:$0xff]
    %v371 = vld [vmem:[#allocation5 + $0x2ec] sm:$0xff]
    %v372 = vld [vmem:[#allocation5 + $0x2f4] sm:$0xf]
    %v373 = vld [vmem:[#allocation5 + $0x2f8] sm:$0xff]
    %v374 = vld [vmem:[#allocation5 + $0x300] sm:$0xff]
    %v375 = vld [vmem:[#allocation5 + $0x308] sm:$0xf]
    %v376 = vld [vmem:[#allocation5 + $0x30c] sm:$0xff]
    %v377 = vld [vmem:[#allocation5 + $0x314] sm:$0xff]
    %v378 = vld [vmem:[#allocation5 + $0x31c] sm:$0xf]
    %v379 = vld [vmem:[#allocation5 + $0x320] sm:$0xff]
    %v380 = vld [vmem:[#allocation5 + $0x328] sm:$0xff]
    %v381 = vld [vmem:[#allocation5 + $0x330] sm:$0xf]
    %v382 = vld [vmem:[#allocation5 + $0x334] sm:$0xff]
    %v383 = vld [vmem:[#allocation5 + $0x33c] sm:$0xff]
    %v384 = vld [vmem:[#allocation5 + $0x344] sm:$0xf]
    %v385 = vld [vmem:[#allocation5 + $0x348] sm:$0xff]
    %v386 = vld [vmem:[#allocation5 + $0x350] sm:$0xff]
    %v387 = vld [vmem:[#allocation5 + $0x358] sm:$0xf]
    %v388 = vld [vmem:[#allocation5 + $0x35c] sm:$0xff]
    %v389 = vld [vmem:[#allocation5 + $0x364] sm:$0xff]
    %v390 = vld [vmem:[#allocation5 + $0x36c] sm:$0xf]
    %v391 = vld [vmem:[#allocation5 + $0x370] sm:$0xff]
    %v392 = vld [vmem:[#allocation5 + $0x378] sm:$0xff]
    %v393 = vld [vmem:[#allocation5 + $0x380] sm:$0xf]
    %v394 = vld [vmem:[#allocation5 + $0x384] sm:$0xff]
    %v395 = vld [vmem:[#allocation5 + $0x38c] sm:$0xff]
    %v396 = vld [vmem:[#allocation5 + $0x394] sm:$0xf]
    %v397 = vld [vmem:[#allocation5 + $0x398] sm:$0xff]
    %v398 = vld [vmem:[#allocation5 + $0x3a0] sm:$0xff]
    %v399 = vld [vmem:[#allocation5 + $0x3a8] sm:$0xf]
    %v400 = vld [vmem:[#allocation5 + $0x3ac] sm:$0xff]
    %v401 = vld [vmem:[#allocation5 + $0x3b4] sm:$0xff]
    %v402 = vld [vmem:[#allocation5 + $0x3bc] sm:$0xf]
    %v403 = vld [vmem:[#allocation5 + $0x3c0] sm:$0xff]
    %v404 = vld [vmem:[#allocation5 + $0x3c8] sm:$0xff]
    %v405 = vld [vmem:[#allocation5 + $0x3d0] sm:$0xf]
    %v406 = vld [vmem:[#allocation5 + $0x3d4] sm:$0xff]
    %v407 = vld [vmem:[#allocation5 + $0x3dc] sm:$0xff]
    %v408 = vld [vmem:[#allocation5 + $0x3e4] sm:$0xf]
    %v409 = vld [vmem:[#allocation5 + $0x3e8] sm:$0xff]
    %v410 = vld [vmem:[#allocation5 + $0x3f0] sm:$0xff]
    %v411 = vld [vmem:[#allocation5 + $0x3f8] sm:$0xf]
    %v412 = vld [vmem:[#allocation5 + $0x3fc] sm:$0xff]
    %v413 = vld [vmem:[#allocation5 + $0x404] sm:$0xff]
    %v414 = vld [vmem:[#allocation5 + $0x40c] sm:$0xf]
    %v415 = vld [vmem:[#allocation5 + $0x410] sm:$0xff]
    %v416 = vld [vmem:[#allocation5 + $0x418] sm:$0xff]
    %v417 = vld [vmem:[#allocation5 + $0x420] sm:$0xf]
    %v418 = vld [vmem:[#allocation5 + $0x424] sm:$0xff]
    %v419 = vld [vmem:[#allocation5 + $0x42c] sm:$0xff]
    %v420 = vld [vmem:[#allocation5 + $0x434] sm:$0xf]
    %v421 = vld [vmem:[#allocation5 + $0x438] sm:$0xff]
    %v422 = vld [vmem:[#allocation5 + $0x440] sm:$0xff]
    %v423 = vld [vmem:[#allocation5 + $0x448] sm:$0xf]
    %v424 = vld [vmem:[#allocation5 + $0x44c] sm:$0xff]
    %v425 = vld [vmem:[#allocation5 + $0x454] sm:$0xff]
    %v426 = vld [vmem:[#allocation5 + $0x45c] sm:$0xf]
    %v427 = vld [vmem:[#allocation5 + $0x460] sm:$0xff]
    %v428 = vld [vmem:[#allocation5 + $0x468] sm:$0xff]
    %v429 = vld [vmem:[#allocation5 + $0x470] sm:$0xf]
    %v430 = vld [vmem:[#allocation5 + $0x474] sm:$0xff]
    %v431 = vld [vmem:[#allocation5 + $0x47c] sm:$0xff]
    %v432 = vld [vmem:[#allocation5 + $0x484] sm:$0xf]
    %v433 = vld [vmem:[#allocation5 + $0x488] sm:$0xff]
    %v434 = vld [vmem:[#allocation5 + $0x490] sm:$0xff]
    %v435 = vld [vmem:[#allocation5 + $0x498] sm:$0xf]
    %v436 = vld [vmem:[#allocation5 + $0x49c] sm:$0xff]
    %v437 = vld [vmem:[#allocation5 + $0x4a4] sm:$0xff]
    %v438 = vld [vmem:[#allocation5 + $0x4ac] sm:$0xf]
    %v439 = vld [vmem:[#allocation5 + $0x4b0] sm:$0xff]
    %v440 = vld [vmem:[#allocation5 + $0x4b8] sm:$0xff]
    %v441 = vld [vmem:[#allocation5 + $0x4c0] sm:$0xf]
    %v442 = vld [vmem:[#allocation5 + $0x4c4] sm:$0xff]
    %v443 = vld [vmem:[#allocation5 + $0x4cc] sm:$0xff]
    %v444 = vld [vmem:[#allocation5 + $0x4d4] sm:$0xf]
    %v445 = vld [vmem:[#allocation5 + $0x4d8] sm:$0xff]
    %v446 = vld [vmem:[#allocation5 + $0x4e0] sm:$0xff]
    %v447 = vld [vmem:[#allocation5 + $0x4e8] sm:$0xf]
    %v448 = vld [vmem:[#allocation5 + $0x4ec] sm:$0xff]
    %v449 = vld [vmem:[#allocation5 + $0x4f4] sm:$0xff]
    %v450 = vld [vmem:[#allocation5 + $0x4fc] sm:$0xf]
    %s451 = scalar_lea.vmem [#allocation8], 2
    %v452 = vld [vmem:[%s451] ss:$4 sm:$0x1f]
    %v454 = vlaneseq
    %v455 = vshrl.u32 %v454, 7
    %v456 = vsub.s32 0, %v455
    %v457 = vrot.slane %v452, %v456
    %v458 = vlaneseq
    %v459 = vshrl.u32 %v458, 7
    %v460 = vsub.s32 1, %v459
    %v461 = vrot.slane %v452, %v460
    %v462 = vlaneseq
    %v463 = vshrl.u32 %v462, 7
    %v464 = vsub.s32 2, %v463
    %v465 = vrot.slane %v452, %v464
    %v466 = vlaneseq
    %v467 = vshrl.u32 %v466, 7
    %v468 = vsub.s32 3, %v467
    %v469 = vrot.slane %v452, %v468
    %v470 = vlaneseq
    %v471 = vshrl.u32 %v470, 7
    %v472 = vsub.s32 4, %v471
    %v473 = vrot.slane %v452, %v472
    %v671 = vunpack.c.l.b16 %v259
    %v672 = vunpack.c.h.b16 %v259
    %v673 = vunpack.c.l.b16 %v260
    %v674 = vunpack.c.h.b16 %v260
    %v675 = vunpack.c.l.b16 %v261
    %v676 = vunpack.c.l.b16 %v262
    %v677 = vunpack.c.h.b16 %v262
    %v678 = vunpack.c.l.b16 %v263
    %v679 = vunpack.c.h.b16 %v263
    %v680 = vunpack.c.l.b16 %v264
    %v681 = vunpack.c.l.b16 %v265
    %v682 = vunpack.c.h.b16 %v265
    %v683 = vunpack.c.l.b16 %v266
    %v684 = vunpack.c.h.b16 %v266
    %v685 = vunpack.c.l.b16 %v267
    %v686 = vunpack.c.l.b16 %v268
    %v687 = vunpack.c.h.b16 %v268
    %v688 = vunpack.c.l.b16 %v269
    %v689 = vunpack.c.h.b16 %v269
    %v690 = vunpack.c.l.b16 %v270
    %v691 = vunpack.c.l.b16 %v271
    %v692 = vunpack.c.h.b16 %v271
    %v693 = vunpack.c.l.b16 %v272
    %v694 = vunpack.c.h.b16 %v272
    %v695 = vunpack.c.l.b16 %v273
    %v696 = vunpack.c.l.b16 %v274
    %v697 = vunpack.c.h.b16 %v274
    %v698 = vunpack.c.l.b16 %v275
    %v699 = vunpack.c.h.b16 %v275
    %v700 = vunpack.c.l.b16 %v276
    %v701 = vunpack.c.l.b16 %v277
    %v702 = vunpack.c.h.b16 %v277
    %v703 = vunpack.c.l.b16 %v278
    %v704 = vunpack.c.h.b16 %v278
    %v705 = vunpack.c.l.b16 %v279
    %v706 = vunpack.c.l.b16 %v280
    %v707 = vunpack.c.h.b16 %v280
    %v708 = vunpack.c.l.b16 %v281
    %v709 = vunpack.c.h.b16 %v281
    %v710 = vunpack.c.l.b16 %v282
    %v711 = vunpack.c.l.b16 %v283
    %v712 = vunpack.c.h.b16 %v283
    %v713 = vunpack.c.l.b16 %v284
    %v714 = vunpack.c.h.b16 %v284
    %v715 = vunpack.c.l.b16 %v285
    %v716 = vunpack.c.l.b16 %v286
    %v717 = vunpack.c.h.b16 %v286
    %v718 = vunpack.c.l.b16 %v287
    %v719 = vunpack.c.h.b16 %v287
    %v720 = vunpack.c.l.b16 %v288
    %v721 = vunpack.c.l.b16 %v289
    %v722 = vunpack.c.h.b16 %v289
    %v723 = vunpack.c.l.b16 %v290
    %v724 = vunpack.c.h.b16 %v290
    %v725 = vunpack.c.l.b16 %v291
    %v726 = vunpack.c.l.b16 %v292
    %v727 = vunpack.c.h.b16 %v292
    %v728 = vunpack.c.l.b16 %v293
    %v729 = vunpack.c.h.b16 %v293
    %v730 = vunpack.c.l.b16 %v294
    %v731 = vunpack.c.l.b16 %v295
    %v732 = vunpack.c.h.b16 %v295
    %v733 = vunpack.c.l.b16 %v296
    %v734 = vunpack.c.h.b16 %v296
    %v735 = vunpack.c.l.b16 %v297
    %v736 = vunpack.c.l.b16 %v298
    %v737 = vunpack.c.h.b16 %v298
    %v738 = vunpack.c.l.b16 %v299
    %v739 = vunpack.c.h.b16 %v299
    %v740 = vunpack.c.l.b16 %v300
    %v741 = vunpack.c.l.b16 %v301
    %v742 = vunpack.c.h.b16 %v301
    %v743 = vunpack.c.l.b16 %v302
    %v744 = vunpack.c.h.b16 %v302
    %v745 = vunpack.c.l.b16 %v303
    %v746 = vunpack.c.l.b16 %v304
    %v747 = vunpack.c.h.b16 %v304
    %v748 = vunpack.c.l.b16 %v305
    %v749 = vunpack.c.h.b16 %v305
    %v750 = vunpack.c.l.b16 %v306
    %v751 = vunpack.c.l.b16 %v307
    %v752 = vunpack.c.h.b16 %v307
    %v753 = vunpack.c.l.b16 %v308
    %v754 = vunpack.c.h.b16 %v308
    %v755 = vunpack.c.l.b16 %v309
    %v756 = vunpack.c.l.b16 %v310
    %v757 = vunpack.c.h.b16 %v310
    %v758 = vunpack.c.l.b16 %v311
    %v759 = vunpack.c.h.b16 %v311
    %v760 = vunpack.c.l.b16 %v312
    %v761 = vunpack.c.l.b16 %v313
    %v762 = vunpack.c.h.b16 %v313
    %v763 = vunpack.c.l.b16 %v314
    %v764 = vunpack.c.h.b16 %v314
    %v765 = vunpack.c.l.b16 %v315
    %v766 = vunpack.c.l.b16 %v316
    %v767 = vunpack.c.h.b16 %v316
    %v768 = vunpack.c.l.b16 %v317
    %v769 = vunpack.c.h.b16 %v317
    %v770 = vunpack.c.l.b16 %v318
    %v771 = vunpack.c.l.b16 %v319
    %v772 = vunpack.c.h.b16 %v319
    %v773 = vunpack.c.l.b16 %v320
    %v774 = vunpack.c.h.b16 %v320
    %v775 = vunpack.c.l.b16 %v321
    %v776 = vunpack.c.l.b16 %v322
    %v777 = vunpack.c.h.b16 %v322
    %v778 = vunpack.c.l.b16 %v323
    %v779 = vunpack.c.h.b16 %v323
    %v780 = vunpack.c.l.b16 %v324
    %v781 = vunpack.c.l.b16 %v325
    %v782 = vunpack.c.h.b16 %v325
    %v783 = vunpack.c.l.b16 %v326
    %v784 = vunpack.c.h.b16 %v326
    %v785 = vunpack.c.l.b16 %v327
    %v786 = vunpack.c.l.b16 %v328
    %v787 = vunpack.c.h.b16 %v328
    %v788 = vunpack.c.l.b16 %v329
    %v789 = vunpack.c.h.b16 %v329
    %v790 = vunpack.c.l.b16 %v330
    %v791 = vunpack.c.l.b16 %v331
    %v792 = vunpack.c.h.b16 %v331
    %v793 = vunpack.c.l.b16 %v332
    %v794 = vunpack.c.h.b16 %v332
    %v795 = vunpack.c.l.b16 %v333
    %v796 = vunpack.c.l.b16 %v334
    %v797 = vunpack.c.h.b16 %v334
    %v798 = vunpack.c.l.b16 %v335
    %v799 = vunpack.c.h.b16 %v335
    %v800 = vunpack.c.l.b16 %v336
    %v801 = vunpack.c.l.b16 %v337
    %v802 = vunpack.c.h.b16 %v337
    %v803 = vunpack.c.l.b16 %v338
    %v804 = vunpack.c.h.b16 %v338
    %v805 = vunpack.c.l.b16 %v339
    %v806 = vunpack.c.l.b16 %v340
    %v807 = vunpack.c.h.b16 %v340
    %v808 = vunpack.c.l.b16 %v341
    %v809 = vunpack.c.h.b16 %v341
    %v810 = vunpack.c.l.b16 %v342
    %v811 = vunpack.c.l.b16 %v343
    %v812 = vunpack.c.h.b16 %v343
    %v813 = vunpack.c.l.b16 %v344
    %v814 = vunpack.c.h.b16 %v344
    %v815 = vunpack.c.l.b16 %v345
    %v816 = vunpack.c.l.b16 %v346
    %v817 = vunpack.c.h.b16 %v346
    %v818 = vunpack.c.l.b16 %v347
    %v819 = vunpack.c.h.b16 %v347
    %v820 = vunpack.c.l.b16 %v348
    %v821 = vunpack.c.l.b16 %v349
    %v822 = vunpack.c.h.b16 %v349
    %v823 = vunpack.c.l.b16 %v350
    %v824 = vunpack.c.h.b16 %v350
    %v825 = vunpack.c.l.b16 %v351
    %v826 = vunpack.c.l.b16 %v352
    %v827 = vunpack.c.h.b16 %v352
    %v828 = vunpack.c.l.b16 %v353
    %v829 = vunpack.c.h.b16 %v353
    %v830 = vunpack.c.l.b16 %v354
    %v831 = vunpack.c.l.b16 %v355
    %v832 = vunpack.c.h.b16 %v355
    %v833 = vunpack.c.l.b16 %v356
    %v834 = vunpack.c.h.b16 %v356
    %v835 = vunpack.c.l.b16 %v357
    %v836 = vunpack.c.l.b16 %v358
    %v837 = vunpack.c.h.b16 %v358
    %v838 = vunpack.c.l.b16 %v359
    %v839 = vunpack.c.h.b16 %v359
    %v840 = vunpack.c.l.b16 %v360
    %v841 = vunpack.c.l.b16 %v361
    %v842 = vunpack.c.h.b16 %v361
    %v843 = vunpack.c.l.b16 %v362
    %v844 = vunpack.c.h.b16 %v362
    %v845 = vunpack.c.l.b16 %v363
    %v846 = vunpack.c.l.b16 %v364
    %v847 = vunpack.c.h.b16 %v364
    %v848 = vunpack.c.l.b16 %v365
    %v849 = vunpack.c.h.b16 %v365
    %v850 = vunpack.c.l.b16 %v366
    %v851 = vunpack.c.l.b16 %v367
    %v852 = vunpack.c.h.b16 %v367
    %v853 = vunpack.c.l.b16 %v368
    %v854 = vunpack.c.h.b16 %v368
    %v855 = vunpack.c.l.b16 %v369
    %v856 = vunpack.c.l.b16 %v370
    %v857 = vunpack.c.h.b16 %v370
    %v858 = vunpack.c.l.b16 %v371
    %v859 = vunpack.c.h.b16 %v371
    %v860 = vunpack.c.l.b16 %v372
    %v861 = vunpack.c.l.b16 %v373
    %v862 = vunpack.c.h.b16 %v373
    %v863 = vunpack.c.l.b16 %v374
    %v864 = vunpack.c.h.b16 %v374
    %v865 = vunpack.c.l.b16 %v375
    %v866 = vunpack.c.l.b16 %v376
    %v867 = vunpack.c.h.b16 %v376
    %v868 = vunpack.c.l.b16 %v377
    %v869 = vunpack.c.h.b16 %v377
    %v870 = vunpack.c.l.b16 %v378
    %v871 = vunpack.c.l.b16 %v379
    %v872 = vunpack.c.h.b16 %v379
    %v873 = vunpack.c.l.b16 %v380
    %v874 = vunpack.c.h.b16 %v380
    %v875 = vunpack.c.l.b16 %v381
    %v876 = vunpack.c.l.b16 %v382
    %v877 = vunpack.c.h.b16 %v382
    %v878 = vunpack.c.l.b16 %v383
    %v879 = vunpack.c.h.b16 %v383
    %v880 = vunpack.c.l.b16 %v384
    %v881 = vunpack.c.l.b16 %v385
    %v882 = vunpack.c.h.b16 %v385
    %v883 = vunpack.c.l.b16 %v386
    %v884 = vunpack.c.h.b16 %v386
    %v885 = vunpack.c.l.b16 %v387
    %v886 = vunpack.c.l.b16 %v388
    %v887 = vunpack.c.h.b16 %v388
    %v888 = vunpack.c.l.b16 %v389
    %v889 = vunpack.c.h.b16 %v389
    %v890 = vunpack.c.l.b16 %v390
    %v891 = vunpack.c.l.b16 %v391
    %v892 = vunpack.c.h.b16 %v391
    %v893 = vunpack.c.l.b16 %v392
    %v894 = vunpack.c.h.b16 %v392
    %v895 = vunpack.c.l.b16 %v393
    %v896 = vunpack.c.l.b16 %v394
    %v897 = vunpack.c.h.b16 %v394
    %v898 = vunpack.c.l.b16 %v395
    %v899 = vunpack.c.h.b16 %v395
    %v900 = vunpack.c.l.b16 %v396
    %v901 = vunpack.c.l.b16 %v397
    %v902 = vunpack.c.h.b16 %v397
    %v903 = vunpack.c.l.b16 %v398
    %v904 = vunpack.c.h.b16 %v398
    %v905 = vunpack.c.l.b16 %v399
    %v906 = vunpack.c.l.b16 %v400
    %v907 = vunpack.c.h.b16 %v400
    %v908 = vunpack.c.l.b16 %v401
    %v909 = vunpack.c.h.b16 %v401
    %v910 = vunpack.c.l.b16 %v402
    %v911 = vunpack.c.l.b16 %v403
    %v912 = vunpack.c.h.b16 %v403
    %v913 = vunpack.c.l.b16 %v404
    %v914 = vunpack.c.h.b16 %v404
    %v915 = vunpack.c.l.b16 %v405
    %v916 = vunpack.c.l.b16 %v406
    %v917 = vunpack.c.h.b16 %v406
    %v918 = vunpack.c.l.b16 %v407
    %v919 = vunpack.c.h.b16 %v407
    %v920 = vunpack.c.l.b16 %v408
    %v921 = vunpack.c.l.b16 %v409
    %v922 = vunpack.c.h.b16 %v409
    %v923 = vunpack.c.l.b16 %v410
    %v924 = vunpack.c.h.b16 %v410
    %v925 = vunpack.c.l.b16 %v411
    %v926 = vunpack.c.l.b16 %v412
    %v927 = vunpack.c.h.b16 %v412
    %v928 = vunpack.c.l.b16 %v413
    %v929 = vunpack.c.h.b16 %v413
    %v930 = vunpack.c.l.b16 %v414
    %v931 = vunpack.c.l.b16 %v415
    %v932 = vunpack.c.h.b16 %v415
    %v933 = vunpack.c.l.b16 %v416
    %v934 = vunpack.c.h.b16 %v416
    %v935 = vunpack.c.l.b16 %v417
    %v936 = vunpack.c.l.b16 %v418
    %v937 = vunpack.c.h.b16 %v418
    %v938 = vunpack.c.l.b16 %v419
    %v939 = vunpack.c.h.b16 %v419
    %v940 = vunpack.c.l.b16 %v420
    %v941 = vunpack.c.l.b16 %v421
    %v942 = vunpack.c.h.b16 %v421
    %v943 = vunpack.c.l.b16 %v422
    %v944 = vunpack.c.h.b16 %v422
    %v945 = vunpack.c.l.b16 %v423
    %v946 = vunpack.c.l.b16 %v424
    %v947 = vunpack.c.h.b16 %v424
    %v948 = vunpack.c.l.b16 %v425
    %v949 = vunpack.c.h.b16 %v425
    %v950 = vunpack.c.l.b16 %v426
    %v951 = vunpack.c.l.b16 %v427
    %v952 = vunpack.c.h.b16 %v427
    %v953 = vunpack.c.l.b16 %v428
    %v954 = vunpack.c.h.b16 %v428
    %v955 = vunpack.c.l.b16 %v429
    %v956 = vunpack.c.l.b16 %v430
    %v957 = vunpack.c.h.b16 %v430
    %v958 = vunpack.c.l.b16 %v431
    %v959 = vunpack.c.h.b16 %v431
    %v960 = vunpack.c.l.b16 %v432
    %v961 = vunpack.c.l.b16 %v433
    %v962 = vunpack.c.h.b16 %v433
    %v963 = vunpack.c.l.b16 %v434
    %v964 = vunpack.c.h.b16 %v434
    %v965 = vunpack.c.l.b16 %v435
    %v966 = vunpack.c.l.b16 %v436
    %v967 = vunpack.c.h.b16 %v436
    %v968 = vunpack.c.l.b16 %v437
    %v969 = vunpack.c.h.b16 %v437
    %v970 = vunpack.c.l.b16 %v438
    %v971 = vunpack.c.l.b16 %v439
    %v972 = vunpack.c.h.b16 %v439
    %v973 = vunpack.c.l.b16 %v440
    %v974 = vunpack.c.h.b16 %v440
    %v975 = vunpack.c.l.b16 %v441
    %v976 = vunpack.c.l.b16 %v442
    %v977 = vunpack.c.h.b16 %v442
    %v978 = vunpack.c.l.b16 %v443
    %v979 = vunpack.c.h.b16 %v443
    %v980 = vunpack.c.l.b16 %v444
    %v981 = vunpack.c.l.b16 %v445
    %v982 = vunpack.c.h.b16 %v445
    %v983 = vunpack.c.l.b16 %v446
    %v984 = vunpack.c.h.b16 %v446
    %v985 = vunpack.c.l.b16 %v447
    %v986 = vunpack.c.l.b16 %v448
    %v987 = vunpack.c.h.b16 %v448
    %v988 = vunpack.c.l.b16 %v449
    %v989 = vunpack.c.h.b16 %v449
    %v990 = vunpack.c.l.b16 %v450
    %v991 = vpack.c.b16 %v676, %v671
    %v992 = vpack.c.b16 %v677, %v672
    %v993 = vpack.c.b16 %v678, %v673
    %v994 = vpack.c.b16 %v679, %v674
    %v995 = vpack.c.b16 %v680, %v675
    %v996 = vpack.c.b16 %v686, %v681
    %v997 = vpack.c.b16 %v687, %v682
    %v998 = vpack.c.b16 %v688, %v683
    %v999 = vpack.c.b16 %v689, %v684
    %v1000 = vpack.c.b16 %v690, %v685
    %v1001 = vpack.c.b16 %v696, %v691
    %v1002 = vpack.c.b16 %v697, %v692
    %v1003 = vpack.c.b16 %v698, %v693
    %v1004 = vpack.c.b16 %v699, %v694
    %v1005 = vpack.c.b16 %v700, %v695
    %v1006 = vpack.c.b16 %v706, %v701
    %v1007 = vpack.c.b16 %v707, %v702
    %v1008 = vpack.c.b16 %v708, %v703
    %v1009 = vpack.c.b16 %v709, %v704
    %v1010 = vpack.c.b16 %v710, %v705
    %v1011 = vpack.c.b16 %v716, %v711
    %v1012 = vpack.c.b16 %v717, %v712
    %v1013 = vpack.c.b16 %v718, %v713
    %v1014 = vpack.c.b16 %v719, %v714
    %v1015 = vpack.c.b16 %v720, %v715
    %v1016 = vpack.c.b16 %v726, %v721
    %v1017 = vpack.c.b16 %v727, %v722
    %v1018 = vpack.c.b16 %v728, %v723
    %v1019 = vpack.c.b16 %v729, %v724
    %v1020 = vpack.c.b16 %v730, %v725
    %v1021 = vpack.c.b16 %v736, %v731
    %v1022 = vpack.c.b16 %v737, %v732
    %v1023 = vpack.c.b16 %v738, %v733
    %v1024 = vpack.c.b16 %v739, %v734
    %v1025 = vpack.c.b16 %v740, %v735
    %v1026 = vpack.c.b16 %v746, %v741
    %v1027 = vpack.c.b16 %v747, %v742
    %v1028 = vpack.c.b16 %v748, %v743
    %v1029 = vpack.c.b16 %v749, %v744
    %v1030 = vpack.c.b16 %v750, %v745
    %v1031 = vpack.c.b16 %v756, %v751
    %v1032 = vpack.c.b16 %v757, %v752
    %v1033 = vpack.c.b16 %v758, %v753
    %v1034 = vpack.c.b16 %v759, %v754
    %v1035 = vpack.c.b16 %v760, %v755
    %v1036 = vpack.c.b16 %v766, %v761
    %v1037 = vpack.c.b16 %v767, %v762
    %v1038 = vpack.c.b16 %v768, %v763
    %v1039 = vpack.c.b16 %v769, %v764
    %v1040 = vpack.c.b16 %v770, %v765
    %v1041 = vpack.c.b16 %v776, %v771
    %v1042 = vpack.c.b16 %v777, %v772
    %v1043 = vpack.c.b16 %v778, %v773
    %v1044 = vpack.c.b16 %v779, %v774
    %v1045 = vpack.c.b16 %v780, %v775
    %v1046 = vpack.c.b16 %v786, %v781
    %v1047 = vpack.c.b16 %v787, %v782
    %v1048 = vpack.c.b16 %v788, %v783
    %v1049 = vpack.c.b16 %v789, %v784
    %v1050 = vpack.c.b16 %v790, %v785
    %v1051 = vpack.c.b16 %v796, %v791
    %v1052 = vpack.c.b16 %v797, %v792
    %v1053 = vpack.c.b16 %v798, %v793
    %v1054 = vpack.c.b16 %v799, %v794
    %v1055 = vpack.c.b16 %v800, %v795
    %v1056 = vpack.c.b16 %v806, %v801
    %v1057 = vpack.c.b16 %v807, %v802
    %v1058 = vpack.c.b16 %v808, %v803
    %v1059 = vpack.c.b16 %v809, %v804
    %v1060 = vpack.c.b16 %v810, %v805
    %v1061 = vpack.c.b16 %v816, %v811
    %v1062 = vpack.c.b16 %v817, %v812
    %v1063 = vpack.c.b16 %v818, %v813
    %v1064 = vpack.c.b16 %v819, %v814
    %v1065 = vpack.c.b16 %v820, %v815
    %v1066 = vpack.c.b16 %v826, %v821
    %v1067 = vpack.c.b16 %v827, %v822
    %v1068 = vpack.c.b16 %v828, %v823
    %v1069 = vpack.c.b16 %v829, %v824
    %v1070 = vpack.c.b16 %v830, %v825
    %v1071 = vpack.c.b16 %v836, %v831
    %v1072 = vpack.c.b16 %v837, %v832
    %v1073 = vpack.c.b16 %v838, %v833
    %v1074 = vpack.c.b16 %v839, %v834
    %v1075 = vpack.c.b16 %v840, %v835
    %v1076 = vpack.c.b16 %v846, %v841
    %v1077 = vpack.c.b16 %v847, %v842
    %v1078 = vpack.c.b16 %v848, %v843
    %v1079 = vpack.c.b16 %v849, %v844
    %v1080 = vpack.c.b16 %v850, %v845
    %v1081 = vpack.c.b16 %v856, %v851
    %v1082 = vpack.c.b16 %v857, %v852
    %v1083 = vpack.c.b16 %v858, %v853
    %v1084 = vpack.c.b16 %v859, %v854
    %v1085 = vpack.c.b16 %v860, %v855
    %v1086 = vpack.c.b16 %v866, %v861
    %v1087 = vpack.c.b16 %v867, %v862
    %v1088 = vpack.c.b16 %v868, %v863
    %v1089 = vpack.c.b16 %v869, %v864
    %v1090 = vpack.c.b16 %v870, %v865
    %v1091 = vpack.c.b16 %v876, %v871
    %v1092 = vpack.c.b16 %v877, %v872
    %v1093 = vpack.c.b16 %v878, %v873
    %v1094 = vpack.c.b16 %v879, %v874
    %v1095 = vpack.c.b16 %v880, %v875
    %v1096 = vpack.c.b16 %v886, %v881
    %v1097 = vpack.c.b16 %v887, %v882
    %v1098 = vpack.c.b16 %v888, %v883
    %v1099 = vpack.c.b16 %v889, %v884
    %v1100 = vpack.c.b16 %v890, %v885
    %v1101 = vpack.c.b16 %v896, %v891
    %v1102 = vpack.c.b16 %v897, %v892
    %v1103 = vpack.c.b16 %v898, %v893
    %v1104 = vpack.c.b16 %v899, %v894
    %v1105 = vpack.c.b16 %v900, %v895
    %v1106 = vpack.c.b16 %v906, %v901
    %v1107 = vpack.c.b16 %v907, %v902
    %v1108 = vpack.c.b16 %v908, %v903
    %v1109 = vpack.c.b16 %v909, %v904
    %v1110 = vpack.c.b16 %v910, %v905
    %v1111 = vpack.c.b16 %v916, %v911
    %v1112 = vpack.c.b16 %v917, %v912
    %v1113 = vpack.c.b16 %v918, %v913
    %v1114 = vpack.c.b16 %v919, %v914
    %v1115 = vpack.c.b16 %v920, %v915
    %v1116 = vpack.c.b16 %v926, %v921
    %v1117 = vpack.c.b16 %v927, %v922
    %v1118 = vpack.c.b16 %v928, %v923
    %v1119 = vpack.c.b16 %v929, %v924
    %v1120 = vpack.c.b16 %v930, %v925
    %v1121 = vpack.c.b16 %v936, %v931
    %v1122 = vpack.c.b16 %v937, %v932
    %v1123 = vpack.c.b16 %v938, %v933
    %v1124 = vpack.c.b16 %v939, %v934
    %v1125 = vpack.c.b16 %v940, %v935
    %v1126 = vpack.c.b16 %v946, %v941
    %v1127 = vpack.c.b16 %v947, %v942
    %v1128 = vpack.c.b16 %v948, %v943
    %v1129 = vpack.c.b16 %v949, %v944
    %v1130 = vpack.c.b16 %v950, %v945
    %v1131 = vpack.c.b16 %v956, %v951
    %v1132 = vpack.c.b16 %v957, %v952
    %v1133 = vpack.c.b16 %v958, %v953
    %v1134 = vpack.c.b16 %v959, %v954
    %v1135 = vpack.c.b16 %v960, %v955
    %v1136 = vpack.c.b16 %v966, %v961
    %v1137 = vpack.c.b16 %v967, %v962
    %v1138 = vpack.c.b16 %v968, %v963
    %v1139 = vpack.c.b16 %v969, %v964
    %v1140 = vpack.c.b16 %v970, %v965
    %v1141 = vpack.c.b16 %v976, %v971
    %v1142 = vpack.c.b16 %v977, %v972
    %v1143 = vpack.c.b16 %v978, %v973
    %v1144 = vpack.c.b16 %v979, %v974
    %v1145 = vpack.c.b16 %v980, %v975
    %v1146 = vpack.c.b16 %v986, %v981
    %v1147 = vpack.c.b16 %v987, %v982
    %v1148 = vpack.c.b16 %v988, %v983
    %v1149 = vpack.c.b16 %v989, %v984
    %v1150 = vpack.c.b16 %v990, %v985
    %1311 = vmatprep.subr.bf16.mxu0 %v992
    %1312 = vmatpush1.bf16.msra.mxu0 %v991
    %1313 = vmatprep.subr.bf16.mxu0 %v997
    %1314 = vmatpush1.bf16.msra.mxu0 %v996
    %1315 = vmatprep.subr.bf16.mxu0 %v1002
    %1316 = vmatpush1.bf16.msra.mxu0 %v1001
    %1317 = vmatprep.subr.bf16.mxu0 %v1007
    %1318 = vmatpush1.bf16.msra.mxu0 %v1006
    %1319 = vmatprep.subr.bf16.mxu0 %v1012
    %1320 = vmatpush1.bf16.msra.mxu0 %v1011
    %1321 = vmatprep.subr.bf16.mxu0 %v1017
    %1322 = vmatpush1.bf16.msra.mxu0 %v1016
    %1323 = vmatprep.subr.bf16.mxu0 %v1022
    %1324 = vmatpush1.bf16.msra.mxu0 %v1021
    %1325 = vmatprep.subr.bf16.mxu0 %v1027
    %1326 = vmatpush1.bf16.msra.mxu0 %v1026
    %1327 = vmatprep.subr.bf16.mxu0 %v1032
    %1328 = vmatpush1.bf16.msra.mxu0 %v1031
    %1329 = vmatprep.subr.bf16.mxu0 %v1037
    %1330 = vmatpush1.bf16.msra.mxu0 %v1036
    %1331 = vmatprep.subr.bf16.mxu0 %v1042
    %1332 = vmatpush1.bf16.msra.mxu0 %v1041
    %1333 = vmatprep.subr.bf16.mxu0 %v1047
    %1334 = vmatpush1.bf16.msra.mxu0 %v1046
    %1335 = vmatprep.subr.bf16.mxu0 %v1052
    %1336 = vmatpush1.bf16.msra.mxu0 %v1051
    %1337 = vmatprep.subr.bf16.mxu0 %v1057
    %1338 = vmatpush1.bf16.msra.mxu0 %v1056
    %1339 = vmatprep.subr.bf16.mxu0 %v1062
    %1340 = vmatpush1.bf16.msra.mxu0 %v1061
    %1341 = vmatprep.subr.bf16.mxu0 %v1067
    %1342 = vmatpush1.bf16.msra.mxu0 %v1066
    %1343 = vmatprep.mubr.bf16.mxu0 %v256
    %1344 = vmatmul.mubr.bf16.gmra.mrb[0].mxu0 %v255
    %v1345 = vpop.f32.mrb[0].mxu0
    %v1346 = vadd.f32 %v457, %v1345
    %v1347 = vpop.f32.mrb[0].mxu0
    %v1348 = vadd.f32 %v461, %v1347
    %v1349 = vpop.f32.mrb[0].mxu0
    %v1350 = vpop.f32.mrb[0].mxu0
    %1351 = vdwg.mxu0
    %1352 = vmatprep.subr.bf16.mxu0 %v1072
    %1353 = vmatpush1.bf16.msra.mxu0 %v1071
    %1354 = vmatprep.subr.bf16.mxu0 %v1077
    %1355 = vmatpush1.bf16.msra.mxu0 %v1076
    %1356 = vmatprep.subr.bf16.mxu0 %v1082
    %1357 = vmatpush1.bf16.msra.mxu0 %v1081
    %1358 = vmatprep.subr.bf16.mxu0 %v1087
    %1359 = vmatpush1.bf16.msra.mxu0 %v1086
    %1360 = vmatprep.subr.bf16.mxu0 %v1092
    %1361 = vmatpush1.bf16.msra.mxu0 %v1091
    %1362 = vmatprep.subr.bf16.mxu0 %v1097
    %1363 = vmatpush1.bf16.msra.mxu0 %v1096
    %1364 = vmatprep.subr.bf16.mxu0 %v1102
    %1365 = vmatpush1.bf16.msra.mxu0 %v1101
    %1366 = vmatprep.subr.bf16.mxu0 %v1107
    %1367 = vmatpush1.bf16.msra.mxu0 %v1106
    %1368 = vmatprep.subr.bf16.mxu0 %v1112
    %1369 = vmatpush1.bf16.msra.mxu0 %v1111
    %1370 = vmatprep.subr.bf16.mxu0 %v1117
    %1371 = vmatpush1.bf16.msra.mxu0 %v1116
    %1372 = vmatprep.subr.bf16.mxu0 %v1122
    %1373 = vmatpush1.bf16.msra.mxu0 %v1121
    %1374 = vmatprep.subr.bf16.mxu0 %v1127
    %1375 = vmatpush1.bf16.msra.mxu0 %v1126
    %1376 = vmatprep.subr.bf16.mxu0 %v1132
    %1377 = vmatpush1.bf16.msra.mxu0 %v1131
    %1378 = vmatprep.subr.bf16.mxu0 %v1137
    %1379 = vmatpush1.bf16.msra.mxu0 %v1136
    %1380 = vmatprep.subr.bf16.mxu0 %v1142
    %1381 = vmatpush1.bf16.msra.mxu0 %v1141
    %1382 = vmatprep.subr.bf16.mxu0 %v1147
    %1383 = vmatpush1.bf16.msra.mxu0 %v1146
    %1384 = vmatprep.mubr.bf16.mxu0 %v258
    %1385 = vmatmul.mubr.bf16.gmra.mrb[0].mxu0 %v257
    %v1386 = vpop.f32.mrb[0].mxu0
    %v1387 = vadd.f32 %v1346, %v1386
    %v1388 = vpop.f32.mrb[0].mxu0
    %v1389 = vadd.f32 %v1348, %v1388
    %v1390 = vpop.f32.mrb[0].mxu0
    %v1391 = vpop.f32.mrb[0].mxu0
    %1392 = vdwg.mxu0
    %1393 = vmatprep.subr.bf16.mxu0 %v994
    %1394 = vmatpush1.bf16.msra.mxu0 %v993
    %1395 = vmatprep.subr.bf16.mxu0 %v999
    %1396 = vmatpush1.bf16.msra.mxu0 %v998
    %1397 = vmatprep.subr.bf16.mxu0 %v1004
    %1398 = vmatpush1.bf16.msra.mxu0 %v1003
    %1399 = vmatprep.subr.bf16.mxu0 %v1009
    %1400 = vmatpush1.bf16.msra.mxu0 %v1008
    %1401 = vmatprep.subr.bf16.mxu0 %v1014
    %1402 = vmatpush1.bf16.msra.mxu0 %v1013
    %1403 = vmatprep.subr.bf16.mxu0 %v1019
    %1404 = vmatpush1.bf16.msra.mxu0 %v1018
    %1405 = vmatprep.subr.bf16.mxu0 %v1024
    %1406 = vmatpush1.bf16.msra.mxu0 %v1023
    %1407 = vmatprep.subr.bf16.mxu0 %v1029
    %1408 = vmatpush1.bf16.msra.mxu0 %v1028
    %1409 = vmatprep.subr.bf16.mxu0 %v1034
    %1410 = vmatpush1.bf16.msra.mxu0 %v1033
    %1411 = vmatprep.subr.bf16.mxu0 %v1039
    %1412 = vmatpush1.bf16.msra.mxu0 %v1038
    %1413 = vmatprep.subr.bf16.mxu0 %v1044
    %1414 = vmatpush1.bf16.msra.mxu0 %v1043
    %1415 = vmatprep.subr.bf16.mxu0 %v1049
    %1416 = vmatpush1.bf16.msra.mxu0 %v1048
    %1417 = vmatprep.subr.bf16.mxu0 %v1054
    %1418 = vmatpush1.bf16.msra.mxu0 %v1053
    %1419 = vmatprep.subr.bf16.mxu0 %v1059
    %1420 = vmatpush1.bf16.msra.mxu0 %v1058
    %1421 = vmatprep.subr.bf16.mxu0 %v1064
    %1422 = vmatpush1.bf16.msra.mxu0 %v1063
    %1423 = vmatprep.subr.bf16.mxu0 %v1069
    %1424 = vmatpush1.bf16.msra.mxu0 %v1068
    %1425 = vmatprep.mubr.bf16.mxu0 %v256
    %1426 = vmatmul.mubr.bf16.gmra.mrb[0].mxu0 %v255
    %v1427 = vpop.f32.mrb[0].mxu0
    %v1428 = vadd.f32 %v465, %v1427
    %v1429 = vpop.f32.mrb[0].mxu0
    %v1430 = vadd.f32 %v469, %v1429
    %v1431 = vpop.f32.mrb[0].mxu0
    %v1432 = vpop.f32.mrb[0].mxu0
    %1433 = vdwg.mxu0
    %1434 = vmatprep.subr.bf16.mxu0 %v1074
    %1435 = vmatpush1.bf16.msra.mxu0 %v1073
    %1436 = vmatprep.subr.bf16.mxu0 %v1079
    %1437 = vmatpush1.bf16.msra.mxu0 %v1078
    %1438 = vmatprep.subr.bf16.mxu0 %v1084
    %1439 = vmatpush1.bf16.msra.mxu0 %v1083
    %1440 = vmatprep.subr.bf16.mxu0 %v1089
    %1441 = vmatpush1.bf16.msra.mxu0 %v1088
    %1442 = vmatprep.subr.bf16.mxu0 %v1094
    %1443 = vmatpush1.bf16.msra.mxu0 %v1093
    %1444 = vmatprep.subr.bf16.mxu0 %v1099
    %1445 = vmatpush1.bf16.msra.mxu0 %v1098
    %1446 = vmatprep.subr.bf16.mxu0 %v1104
    %1447 = vmatpush1.bf16.msra.mxu0 %v1103
    %1448 = vmatprep.subr.bf16.mxu0 %v1109
    %1449 = vmatpush1.bf16.msra.mxu0 %v1108
    %1450 = vmatprep.subr.bf16.mxu0 %v1114
    %1451 = vmatpush1.bf16.msra.mxu0 %v1113
    %1452 = vmatprep.subr.bf16.mxu0 %v1119
    %1453 = vmatpush1.bf16.msra.mxu0 %v1118
    %1454 = vmatprep.subr.bf16.mxu0 %v1124
    %1455 = vmatpush1.bf16.msra.mxu0 %v1123
    %1456 = vmatprep.subr.bf16.mxu0 %v1129
    %1457 = vmatpush1.bf16.msra.mxu0 %v1128
    %1458 = vmatprep.subr.bf16.mxu0 %v1134
    %1459 = vmatpush1.bf16.msra.mxu0 %v1133
    %1460 = vmatprep.subr.bf16.mxu0 %v1139
    %1461 = vmatpush1.bf16.msra.mxu0 %v1138
    %1462 = vmatprep.subr.bf16.mxu0 %v1144
    %1463 = vmatpush1.bf16.msra.mxu0 %v1143
    %1464 = vmatprep.subr.bf16.mxu0 %v1149
    %1465 = vmatpush1.bf16.msra.mxu0 %v1148
    %1466 = vmatprep.mubr.bf16.mxu0 %v258
    %1467 = vmatmul.mubr.bf16.gmra.mrb[0].mxu0 %v257
    %v1468 = vpop.f32.mrb[0].mxu0
    %v1469 = vadd.f32 %v1428, %v1468
    %v1470 = vpop.f32.mrb[0].mxu0
    %v1471 = vadd.f32 %v1430, %v1470
    %v1472 = vpop.f32.mrb[0].mxu0
    %v1473 = vpop.f32.mrb[0].mxu0
    %1474 = vdwg.mxu0
    %1475 = vmatprep.subr.bf16.mxu0 0
    %1476 = vmatpush1.bf16.msra.mxu0 %v995
    %1477 = vmatprep.subr.bf16.mxu0 0
    %1478 = vmatpush1.bf16.msra.mxu0 %v1000
    %1479 = vmatprep.subr.bf16.mxu0 0
    %1480 = vmatpush1.bf16.msra.mxu0 %v1005
    %1481 = vmatprep.subr.bf16.mxu0 0
    %1482 = vmatpush1.bf16.msra.mxu0 %v1010
    %1483 = vmatprep.subr.bf16.mxu0 0
    %1484 = vmatpush1.bf16.msra.mxu0 %v1015
    %1485 = vmatprep.subr.bf16.mxu0 0
    %1486 = vmatpush1.bf16.msra.mxu0 %v1020
    %1487 = vmatprep.subr.bf16.mxu0 0
    %1488 = vmatpush1.bf16.msra.mxu0 %v1025
    %1489 = vmatprep.subr.bf16.mxu0 0
    %1490 = vmatpush1.bf16.msra.mxu0 %v1030
    %1491 = vmatprep.subr.bf16.mxu0 0
    %1492 = vmatpush1.bf16.msra.mxu0 %v1035
    %1493 = vmatprep.subr.bf16.mxu0 0
    %1494 = vmatpush1.bf16.msra.mxu0 %v1040
    %1495 = vmatprep.subr.bf16.mxu0 0
    %1496 = vmatpush1.bf16.msra.mxu0 %v1045
    %1497 = vmatprep.subr.bf16.mxu0 0
    %1498 = vmatpush1.bf16.msra.mxu0 %v1050
    %1499 = vmatprep.subr.bf16.mxu0 0
    %1500 = vmatpush1.bf16.msra.mxu0 %v1055
    %1501 = vmatprep.subr.bf16.mxu0 0
    %1502 = vmatpush1.bf16.msra.mxu0 %v1060
    %1503 = vmatprep.subr.bf16.mxu0 0
    %1504 = vmatpush1.bf16.msra.mxu0 %v1065
    %1505 = vmatprep.subr.bf16.mxu0 0
    %1506 = vmatpush1.bf16.msra.mxu0 %v1070
    %1507 = vmatprep.mubr.bf16.mxu0 %v256
    %1508 = vmatmul.mubr.bf16.gmra.mrb[0].mxu0 %v255
    %v1509 = vpop.f32.mrb[0].mxu0
    %v1510 = vadd.f32 %v473, %v1509
    %v1511 = vpop.f32.mrb[0].mxu0
    %v1512 = vpop.f32.mrb[0].mxu0
    %v1513 = vpop.f32.mrb[0].mxu0
    %1514 = vdwg.mxu0
    %1515 = vmatprep.subr.bf16.mxu0 0
    %1516 = vmatpush1.bf16.msra.mxu0 %v1075
    %1517 = vmatprep.subr.bf16.mxu0 0
    %1518 = vmatpush1.bf16.msra.mxu0 %v1080
    %1519 = vmatprep.subr.bf16.mxu0 0
    %1520 = vmatpush1.bf16.msra.mxu0 %v1085
    %1521 = vmatprep.subr.bf16.mxu0 0
    %1522 = vmatpush1.bf16.msra.mxu0 %v1090
    %1523 = vmatprep.subr.bf16.mxu0 0
    %1524 = vmatpush1.bf16.msra.mxu0 %v1095
    %1525 = vmatprep.subr.bf16.mxu0 0
    %1526 = vmatpush1.bf16.msra.mxu0 %v1100
    %1527 = vmatprep.subr.bf16.mxu0 0
    %1528 = vmatpush1.bf16.msra.mxu0 %v1105
    %1529 = vmatprep.subr.bf16.mxu0 0
    %1530 = vmatpush1.bf16.msra.mxu0 %v1110
    %1531 = vmatprep.subr.bf16.mxu0 0
    %1532 = vmatpush1.bf16.msra.mxu0 %v1115
    %1533 = vmatprep.subr.bf16.mxu0 0
    %1534 = vmatpush1.bf16.msra.mxu0 %v1120
    %1535 = vmatprep.subr.bf16.mxu0 0
    %1536 = vmatpush1.bf16.msra.mxu0 %v1125
    %1537 = vmatprep.subr.bf16.mxu0 0
    %1538 = vmatpush1.bf16.msra.mxu0 %v1130
    %1539 = vmatprep.subr.bf16.mxu0 0
    %1540 = vmatpush1.bf16.msra.mxu0 %v1135
    %1541 = vmatprep.subr.bf16.mxu0 0
    %1542 = vmatpush1.bf16.msra.mxu0 %v1140
    %1543 = vmatprep.subr.bf16.mxu0 0
    %1544 = vmatpush1.bf16.msra.mxu0 %v1145
    %1545 = vmatprep.subr.bf16.mxu0 0
    %1546 = vmatpush1.bf16.msra.mxu0 %v1150
    %1547 = vmatprep.mubr.bf16.mxu0 %v258
    %1548 = vmatmul.mubr.bf16.gmra.mrb[0].mxu0 %v257
    %v1549 = vpop.f32.mrb[0].mxu0
    %v1550 = vadd.f32 %v1510, %v1549
    %v1551 = vpop.f32.mrb[0].mxu0
    %v1552 = vpop.f32.mrb[0].mxu0
    %v1553 = vpop.f32.mrb[0].mxu0
    %1554 = vdwg.mxu0
    %v1555 = vsel %vm91, %v1387, 0.0
    %v1556 = vsel %vm91, %v1389, 0.0
    %v1557 = vadd.f32 %v1555, %v1556
    %v1558 = vsel %vm91, %v1469, 0.0
    %v1559 = vadd.f32 %v1557, %v1558
    %v1560 = vsel %vm91, %v1471, 0.0
    %v1561 = vadd.f32 %v1559, %v1560
    %v1562 = vsel %vm91, %v1550, 0.0
    %v1563 = vadd.f32 %v1561, %v1562
    %1564 = vadd.xlane.f32.xlu0 %v1563
    %v1565 = vpop.xlane.xlu0 %1564
    %v1566 = vmul.f32 %v1565, 0.0016666667
    %v1567 = vsub.f32 %v1387, %v1566
    %v1568 = vsub.f32 %v1389, %v1566
    %v1569 = vsub.f32 %v1469, %v1566
    %v1570 = vsub.f32 %v1471, %v1566
    %v1571 = vsub.f32 %v1550, %v1566
    %v1572 = vmul.f32 %v1567, %v1567
    %v1573 = vmul.f32 %v1568, %v1568
    %v1574 = vmul.f32 %v1569, %v1569
    %v1575 = vmul.f32 %v1570, %v1570
    %v1576 = vmul.f32 %v1571, %v1571
    %v1577 = vsel %vm91, %v1572, 0.0
    %v1578 = vsel %vm91, %v1573, 0.0
    %v1579 = vadd.f32 %v1577, %v1578
    %v1580 = vsel %vm91, %v1574, 0.0
    %v1581 = vadd.f32 %v1579, %v1580
    %v1582 = vsel %vm91, %v1575, 0.0
    %v1583 = vadd.f32 %v1581, %v1582
    %v1584 = vsel %vm91, %v1576, 0.0
    %v1585 = vadd.f32 %v1583, %v1584
    %1586 = vadd.xlane.f32.xlu0 %v1585
    %v1587 = vpop.xlane.xlu0 %1586
    %v1588 = vmul.f32 %v1566, %v1566
    %v1589 = vmul.f32 %v1588, 40.0
    %v1590 = vsub.f32 %v1587, %v1589
    %v1591 = vmul.f32 %v1590, 0.0016666667
    %v1592 = vmax.f32 %v1591, 0.0
    %v1593 = vadd.f32 %v1592, 1e-05
    %v1594 = vrsqrt.pop %v1593
    %v1595 = vmul.f32 %v1567, %v1594
    %v1596 = vmul.f32 %v1568, %v1594
    %v1597 = vmul.f32 %v1569, %v1594
    %v1598 = vmul.f32 %v1570, %v1594
    %v1599 = vmul.f32 %v1571, %v1594
    %v1600 = vld [vmem:[#allocation8] ss:$4 sm:$0x1f]
    %v1602 = vlaneseq
    %v1603 = vshrl.u32 %v1602, 7
    %v1604 = vsub.s32 0, %v1603
    %v1605 = vrot.slane %v1600, %v1604
    %v1606 = vlaneseq
    %v1607 = vshrl.u32 %v1606, 7
    %v1608 = vsub.s32 1, %v1607
    %v1609 = vrot.slane %v1600, %v1608
    %v1610 = vlaneseq
    %v1611 = vshrl.u32 %v1610, 7
    %v1612 = vsub.s32 2, %v1611
    %v1613 = vrot.slane %v1600, %v1612
    %v1614 = vlaneseq
    %v1615 = vshrl.u32 %v1614, 7
    %v1616 = vsub.s32 3, %v1615
    %v1617 = vrot.slane %v1600, %v1616
    %v1618 = vlaneseq
    %v1619 = vshrl.u32 %v1618, 7
    %v1620 = vsub.s32 4, %v1619
    %v1621 = vrot.slane %v1600, %v1620
    %v1627 = vmul.f32 %v1595, %v1605
    %v1628 = vmul.f32 %v1596, %v1609
    %v1629 = vmul.f32 %v1597, %v1613
    %v1630 = vmul.f32 %v1598, %v1617
    %v1631 = vmul.f32 %v1599, %v1621
    %s1632 = scalar_lea.vmem [#allocation8], 1
    %v1633 = vld [vmem:[%s1632] ss:$4 sm:$0x1f]
    %v1635 = vlaneseq
    %v1636 = vshrl.u32 %v1635, 7
    %v1637 = vsub.s32 0, %v1636
    %v1638 = vrot.slane %v1633, %v1637
    %v1639 = vlaneseq
    %v1640 = vshrl.u32 %v1639, 7
    %v1641 = vsub.s32 1, %v1640
    %v1642 = vrot.slane %v1633, %v1641
    %v1643 = vlaneseq
    %v1644 = vshrl.u32 %v1643, 7
    %v1645 = vsub.s32 2, %v1644
    %v1646 = vrot.slane %v1633, %v1645
    %v1647 = vlaneseq
    %v1648 = vshrl.u32 %v1647, 7
    %v1649 = vsub.s32 3, %v1648
    %v1650 = vrot.slane %v1633, %v1649
    %v1651 = vlaneseq
    %v1652 = vshrl.u32 %v1651, 7
    %v1653 = vsub.s32 4, %v1652
    %v1654 = vrot.slane %v1633, %v1653
    %v1660 = vadd.f32 %v1627, %v1638
    %v1661 = vadd.f32 %v1628, %v1642
    %v1662 = vadd.f32 %v1629, %v1646
    %v1663 = vadd.f32 %v1630, %v1650
    %v1664 = vadd.f32 %v1631, %v1654
    %v1665 = vpack.c.bf16 %v1660, %v1660
    %v1666 = vpack.c.bf16 %v1661, %v1661
    %v1667 = vpack.c.bf16 %v1662, %v1662
    %v1668 = vpack.c.bf16 %v1663, %v1663
    %v1669 = vpack.c.bf16 %v1664, %v1664
    %v1675 = vcombine.low %v1665, %v1666
    %v1676 = vcombine.low %v1667, %v1668
    %v1678 = vunpack.c.l.s4 1966171168
    %v1679 = vunpack.c.0.s8 %v1678
    %v1680 = vlaneseq
    %v1681 = vshrl.u32 %v1680, 7
    %v1682 = vsub.s32 %v1679, %v1681
    %v1683 = vrot.slane %v1675, %v1682
    %v1685 = vunpack.c.l.s4 1966171168
    %v1686 = vunpack.c.0.s8 %v1685
    %v1687 = vlaneseq
    %v1688 = vshrl.u32 %v1687, 7
    %v1689 = vsub.s32 %v1686, %v1688
    %v1690 = vrot.slane %v1676, %v1689
    %v1692 = vunpack.c.l.s4 1966171168
    %v1693 = vunpack.c.0.s8 %v1692
    %v1694 = vlaneseq
    %v1695 = vshrl.u32 %v1694, 7
    %v1696 = vsub.s32 %v1693, %v1695
    %v1697 = vrot.slane %v1669, %v1696
    %v1698 = vcombine.low %v1683, %v1690
    %v1700 = vunpack.c.l.s4 1966171168
    %v1701 = vunpack.c.0.s8 %v1700
    %v1702 = vlaneseq
    %v1703 = vshrl.u32 %v1702, 7
    %v1704 = vsub.s32 %v1701, %v1703
    %v1705 = vrot.slane %v1698, %v1704
    %v1707 = vunpack.c.l.s4 1966171168
    %v1708 = vunpack.c.0.s8 %v1707
    %v1709 = vlaneseq
    %v1710 = vshrl.u32 %v1709, 7
    %v1711 = vsub.s32 %v1708, %v1710
    %v1712 = vrot.slane %v1697, %v1711
    %v1713 = vcombine.low %v1705, %v1712
    %1715 = vst [vmem:[#allocation10] sm:$0x1f] %v1713
    // Predicated region
    $region34: #{tpu_custom_call.1} parent=1 // pred_check
      _
    $region35: #{tpu_custom_call.1} parent=1 // pred_check_branch
      %1717 = sbr.rel (0) target = $region37
    $region36: #{tpu_custom_call.1} parent=1 // pred_region
      %s1719 = ssub.s32 80, 80
      %1720 = vsyncadd [#allocation4], %s1719
      %s1722 = sshll.u32 [#allocation10], 4
      %s1723 = int_to_ptr.vmem [resolvable:$true] %s1722
      %1725 = dma.vmem_to_hbm [thread:$0]  %s1723, 80, %s4, [#allocation4]
    $region37: #{tpu_custom_call.1} parent=1 // pred_fallthru
      _
    // Predicated region
    $region38: #{tpu_custom_call.1} parent=1 // pred_check
      _
    $region39: #{tpu_custom_call.1} parent=1 // pred_check_branch
      %1727 = sbr.rel (0) target = $region41
    $region40: #{tpu_custom_call.1} parent=1 // pred_region
      %1728 = dma.done [#allocation4], 80
    $region41: #{tpu_custom_call.1} parent=1 // pred_fallthru
      _
    %1729 = vsyncpa [#allocation3], 1
    %1730 = vsyncpa [#allocation6], 1
    %1731 = vsyncpa [#allocation9], 1
    %1732 = vsyncpa [#allocation4], 1

</llo_original>
